<compile_context>
chip_gen: v7x
topology: tpu7x:2x2x1
jax: 0.10.0
libtpu: 0.0.40
codegen_flags: <defaults>
</compile_context>

<pallas_src>
import functools

import jax
import jax.numpy as jnp
from jax.experimental import pallas as pl
from jax.experimental.pallas import tpu as pltpu


def _grid_max_pool_kernel(x_ref, o_ref, wext_ref, hext_ref, *, h, w, ks, inv):
    # x_ref   : (h, w, T)           channels-last input block (T = lane tile over B*C)
    # o_ref   : (h, w, T)           output block
    # wext_ref: (h, w + pad, T)     VMEM scratch, zero-extended along W   (pad = (ks-1)*inv)
    # hext_ref: (h + pad, w, T)     VMEM scratch: column-pass result, zero-extended along H
    p = ks // 2
    pad = (ks - 1) * inv
    t = x_ref.shape[-1]
    dt = x_ref.dtype

    # Distinct source offsets seen by an *interior* output pixel (all ks pool taps valid):
    # d = (tap - p) + shift*inv.  Duplicates collapse (max is idempotent).
    offs = sorted({(b - p) + s * inv for b in range(ks) for s in range(ks)})

    # Zero-extended copy of the input along W: reproduces F.pad's right-side zeros so every
    # column-pass tap is a contiguous, mask-free in-bounds read.  (See TODO at top of file.)
    wext_ref[:, :w, :] = x_ref[...]
    if pad:
        wext_ref[:, w:, :] = jnp.zeros((h, pad, t), dt)

    # ============================ column pass: colmax -> hext[0:h] ============================
    # Interior output columns j in [p, w-p): every pool tap is in range -> one register chain
    # over the dedup'd offsets, one store.  Reads past column w land in wext's zero region,
    # which is exactly the F.pad zero contribution.
    ilo, ihi = p, w - p
    if ihi > ilo:
        acc = None
        for d in offs:
            sl = wext_ref[:, ilo + d:ihi + d, :]
            acc = sl if acc is None else jnp.maximum(acc, sl)
        hext_ref[:h, ilo:ihi, :] = acc

    # p-wide border strips: pool taps whose window column falls outside [0, w) are excluded
    # (MaxPool2d's implicit -inf border), so accumulate exactly per border column.
    for j in sorted(set(range(0, min(p, w))) | set(range(max(ihi, 0), w))):
        xs = sorted({xc + s * inv
                     for xc in range(max(0, j - p), min(w, j + p + 1))
                     for s in range(ks)})
        acc = None
        for xcol in xs:
            sl = wext_ref[:, xcol:xcol + 1, :]
            acc = sl if acc is None else jnp.maximum(acc, sl)
        hext_ref[:h, j:j + 1, :] = acc

    # Rows shifted in from below the image are all zeros (F.pad); store once per step
    # (do NOT gate on program_id==0: under the "parallel" grid each core must initialize it).
    if pad:
        hext_ref[h:, :, :] = jnp.zeros((pad, w, t), dt)

    # ============================== row pass: hext -> o_ref ==================================
    # Shifts are along the leading axis -> free whole-tile slices (no sublane/lane shuffles).
    rlo, rhi = p, h - p
    if rhi > rlo:
        acc = None
        for d in offs:
            sl = hext_ref[rlo + d:rhi + d, :, :]
            acc = sl if acc is None else jnp.maximum(acc, sl)
        o_ref[rlo:rhi, :, :] = acc.astype(o_ref.dtype)

    for i in sorted(set(range(0, min(p, h))) | set(range(max(rhi, 0), h))):
        ys = sorted({yc + s * inv
                     for yc in range(max(0, i - p), min(h, i + p + 1))
                     for s in range(ks)})
        acc = None
        for yrow in ys:
            sl = hext_ref[yrow:yrow + 1, :, :]
            acc = sl if acc is None else jnp.maximum(acc, sl)
        o_ref[i:i + 1, :, :] = acc.astype(o_ref.dtype)


def _vmem_capacity_bytes():
    """Physical VMEM of the local chip (v5e/v6e: 128 MiB, v7x: 64 MiB/TC); safe fallback."""
    try:
        return int(pltpu.get_tpu_info().vmem_capacity_bytes)
    except Exception:
        return 64 * 1024 * 1024


def _per_lane_live_bytes(h, w, pad, itemsize):
    # 2x double-buffered input + 2x double-buffered output + wext + hext, per lane of B*C.
    return (4 * h * w + h * (w + pad) + (h + pad) * w) * itemsize


def _pick_lane_tile(bc, h, w, pad, itemsize, vmem_cap):
    """Lane tile over B*C: multiples of 128 (unmasked lane-dense stores), generation- and
    grid-length-aware (per perf review)."""
    if bc <= 128:
        return bc                                       # single full-width block
    per_lane_block = h * w * itemsize
    per_lane_live = _per_lane_live_bytes(h, w, pad, itemsize)

    # Per-block budget: big enough to amortize ~0.35us/step overhead; smaller on v7x (64 MiB).
    block_budget = (4 << 20) if vmem_cap >= (96 << 20) else (3 << 20)
    cap_block = max(128, (block_budget // per_lane_block) // 128 * 128)
    # Total live VMEM (double buffers + scratch) must fit with headroom.
    cap_live = max(128, ((vmem_cap * 3 // 5) // per_lane_live) // 128 * 128)

    need = 128 * pl.cdiv(bc, 128)
    tile = min(cap_block, cap_live, need)

    # Grid-length awareness: always >= 2 steps when there is more than one lane group, and
    # prefer >= 4 steps (v7x: 2 TCs x >= 2 pipelined steps) while blocks stay >= ~0.5 MiB.
    while tile > 128 and pl.cdiv(need, tile) < 2:
        tile = max(128, (tile // 2) // 128 * 128)
    half_mib_lanes = max(128, ((1 << 19) // per_lane_block) // 128 * 128)
    while tile > half_mib_lanes and pl.cdiv(need, tile) < 4:
        tile = max(half_mib_lanes, (tile // 2) // 128 * 128)
    return tile


def grid_max_pool(x, t_size, kernel_size=3, stride=1):
    """x: (B, C, H, W) array (NCHW, matching the PyTorch module)."""
    # TODO(synk): general stride would change the pooled output size; module default is stride=1.
    assert stride == 1, "only stride=1 is supported"
    assert kernel_size % 2 == 1, "odd kernel_size expected (padding = kernel_size // 2)"
    b, c, h, w = x.shape
    assert h == w
    ks = kernel_size
    inv = h // t_size
    pad = (ks - 1) * inv
    bc = b * c
    itemsize = x.dtype.itemsize

    # Channels-last lane-dense layout: (H, W, B*C) -- B*C rides the 128-lane axis, both spatial
    # shift axes stay off the lanes.  (Layout plumbing; see TODO at top of file.)
    xl = jnp.transpose(x.reshape(bc, h, w), (1, 2, 0))

    vmem_cap = _vmem_capacity_bytes()
    tile_bc = _pick_lane_tile(bc, h, w, pad, itemsize, vmem_cap)
    pad_bc = (-bc) % tile_bc
    if pad_bc:                                          # only when tile does not divide B*C
        xl = jnp.pad(xl, ((0, 0), (0, 0), (0, pad_bc)))
    bct = bc + pad_bc

    per_lane_live = _per_lane_live_bytes(h, w, pad, itemsize)
    live_bytes = tile_bc * per_lane_live
    vmem_limit = int(min(vmem_cap * 3 // 4, max(32 << 20, live_bytes * 3 // 2)))

    n_offs = len({(bb - ks // 2) + s * inv for bb in range(ks) for s in range(ks)})
    kernel = functools.partial(_grid_max_pool_kernel, h=h, w=w, ks=ks, inv=inv)

    # TODO(synk): very large H*W with small B*C would additionally need spatial tiling (halos).
    out = pl.pallas_call(
        kernel,
        out_shape=jax.ShapeDtypeStruct((h, w, bct), x.dtype),
        grid_spec=pltpu.PrefetchScalarGridSpec(
            num_scalar_prefetch=0,
            grid=(bct // tile_bc,),
            in_specs=[pl.BlockSpec((h, w, tile_bc), lambda i: (0, 0, i))],
            out_specs=pl.BlockSpec((h, w, tile_bc), lambda i: (0, 0, i)),
            scratch_shapes=[
                pltpu.VMEM((h, w + pad, tile_bc), x.dtype),   # zero-extended along W
                pltpu.VMEM((h + pad, w, tile_bc), x.dtype),   # column-pass result, zero rows below
            ],
        ),
        compiler_params=pltpu.CompilerParams(
            dimension_semantics=("parallel",),
            vmem_limit_bytes=vmem_limit,
        ),
        cost_estimate=pl.CostEstimate(
            flops=2 * n_offs * h * w * bct,                   # compares across both passes
            transcendentals=0,
            bytes_accessed=2 * h * w * bct * itemsize,
        ),
    )(xl)

    if pad_bc:
        out = out[:, :, :bc]
    return jnp.transpose(out, (2, 0, 1)).reshape(b, c, h, w)


def _reference_grid_max_pool(x, t_size, kernel_size=3):
    """Pure-JAX mirror of the PyTorch forward, for correctness checking."""
    bsz, c, h, w = x.shape
    ks = kernel_size
    p = ks // 2
    inv = h // t_size
    outs = []
    for row in range(ks):
        for col in range(ks):
            sh = x[:, :, row * inv:, col * inv:]
            sh = jnp.pad(sh, ((0, 0), (0, 0), (0, row * inv), (0, col * inv)))
            padded = jnp.pad(sh, ((0, 0), (0, 0), (p, p), (p, p)),
                             constant_values=-jnp.inf)
            pooled = jnp.full_like(x, -jnp.inf)
            for a in range(ks):
                for b2 in range(ks):
                    pooled = jnp.maximum(pooled, padded[:, :, a:a + h, b2:b2 + w])
            outs.append(pooled)
    return jnp.max(jnp.stack(outs), axis=0)


if __name__ == "__main__":
    key = jax.random.PRNGKey(0)

    # Test 1: the module's small example shape (single block, lanes = B*C = 8, inv = 4).
    B, C, H, W = 2, 4, 16, 16
    t_size = 4
    x1 = jax.random.normal(key, (B, C, H, W), dtype=jnp.float32)
    out1 = jax.block_until_ready(grid_max_pool(x1, t_size=t_size, kernel_size=3, stride=1))
    ref1 = _reference_grid_max_pool(x1, t_size=t_size, kernel_size=3)
    assert out1.shape == (B, C, H, W)
    assert jnp.allclose(out1, ref1, atol=1e-6, rtol=1e-6), "mismatch vs reference (test 1)"

    # Test 2: exercises the lane-tiled multi-block "parallel" grid path and a different inv.
    B2, C2 = 1, 2048                # bc = 2048 -> tile_bc = 512, grid = (4,)
    x2 = jax.random.normal(jax.random.PRNGKey(1), (B2, C2, H, W), dtype=jnp.float32)
    out2 = jax.block_until_ready(grid_max_pool(x2, t_size=8, kernel_size=3, stride=1))
    ref2 = _reference_grid_max_pool(x2, t_size=8, kernel_size=3)
    assert jnp.allclose(out2, ref2, atol=1e-6, rtol=1e-6), "mismatch vs reference (test 2)"

    print("KERNEL_OK")
</pallas_src>

<mosaic_0001>
module attributes {stable_mosaic.version = 11 : i64} {
  func.func @_grid_max_pool_kernel(%arg0: i32, %arg1: memref<16x16x8xf32, #tpu.memory_space<vmem>>, %arg2: memref<16x16x8xf32, #tpu.memory_space<vmem>>, %arg3: memref<16x24x8xf32, #tpu.memory_space<vmem>>, %arg4: memref<24x16x8xf32, #tpu.memory_space<vmem>>) attributes {dimension_semantics = [#tpu.dimension_semantics<parallel>], iteration_bounds = array<i64: 1>, scalar_prefetch = 0 : i64, scratch_operands = 2 : i64, tpu.core_type = #tpu.core_type<tc>, window_params = [{transform_indices = @transform_0, window_bounds = array<i64: 16, 16, 8>}, {transform_indices = @transform_1, window_bounds = array<i64: 16, 16, 8>}]} {
    %c0 = arith.constant 0 : index
    %c0_0 = arith.constant 0 : index
    %c0_1 = arith.constant 0 : index
    %0 = vector.load %arg1[%c0, %c0_0, %c0_1] : memref<16x16x8xf32, #tpu.memory_space<vmem>>, vector<16x16x8xf32>
    %c0_2 = arith.constant 0 : index
    %c0_3 = arith.constant 0 : index
    %c0_4 = arith.constant 0 : index
    %1 = vector.load %arg3[%c0_2, %c0_3, %c0_4] : memref<16x24x8xf32, #tpu.memory_space<vmem>>, vector<16x16x8xf32>
    tpu.vector_store %arg3[%c0_2, %c0_3, %c0_4], %0 {strides = array<i32>} : memref<16x24x8xf32, #tpu.memory_space<vmem>>, vector<16x16x8xf32>,
    %cst = arith.constant 0.000000e+00 : f32
    %2 = vector.broadcast %cst : f32 to vector<16x8x8xf32>
    %c0_5 = arith.constant 0 : index
    %c16 = arith.constant 16 : index
    %c0_6 = arith.constant 0 : index
    %3 = vector.load %arg3[%c0_5, %c16, %c0_6] : memref<16x24x8xf32, #tpu.memory_space<vmem>>, vector<16x8x8xf32>
    tpu.vector_store %arg3[%c0_5, %c16, %c0_6], %2 {strides = array<i32>} : memref<16x24x8xf32, #tpu.memory_space<vmem>>, vector<16x8x8xf32>,
    %c0_7 = arith.constant 0 : index
    %c0_8 = arith.constant 0 : index
    %c0_9 = arith.constant 0 : index
    %4 = vector.load %arg3[%c0_7, %c0_8, %c0_9] : memref<16x24x8xf32, #tpu.memory_space<vmem>>, vector<16x14x8xf32>
    %c0_10 = arith.constant 0 : index
    %c1 = arith.constant 1 : index
    %c0_11 = arith.constant 0 : index
    %5 = vector.load %arg3[%c0_10, %c1, %c0_11] : memref<16x24x8xf32, #tpu.memory_space<vmem>>, vector<16x14x8xf32>
    %6 = arith.maximumf %4, %5 : vector<16x14x8xf32>
    %c0_12 = arith.constant 0 : index
    %c2 = arith.constant 2 : index
    %c0_13 = arith.constant 0 : index
    %7 = vector.load %arg3[%c0_12, %c2, %c0_13] : memref<16x24x8xf32, #tpu.memory_space<vmem>>, vector<16x14x8xf32>
    %8 = arith.maximumf %6, %7 : vector<16x14x8xf32>
    %c0_14 = arith.constant 0 : index
    %c4 = arith.constant 4 : index
    %c0_15 = arith.constant 0 : index
    %9 = vector.load %arg3[%c0_14, %c4, %c0_15] : memref<16x24x8xf32, #tpu.memory_space<vmem>>, vector<16x14x8xf32>
    %10 = arith.maximumf %8, %9 : vector<16x14x8xf32>
    %c0_16 = arith.constant 0 : index
    %c5 = arith.constant 5 : index
    %c0_17 = arith.constant 0 : index
    %11 = vector.load %arg3[%c0_16, %c5, %c0_17] : memref<16x24x8xf32, #tpu.memory_space<vmem>>, vector<16x14x8xf32>
    %12 = arith.maximumf %10, %11 : vector<16x14x8xf32>
    %c0_18 = arith.constant 0 : index
    %c6 = arith.constant 6 : index
    %c0_19 = arith.constant 0 : index
    %13 = vector.load %arg3[%c0_18, %c6, %c0_19] : memref<16x24x8xf32, #tpu.memory_space<vmem>>, vector<16x14x8xf32>
    %14 = arith.maximumf %12, %13 : vector<16x14x8xf32>
    %c0_20 = arith.constant 0 : index
    %c8 = arith.constant 8 : index
    %c0_21 = arith.constant 0 : index
    %15 = vector.load %arg3[%c0_20, %c8, %c0_21] : memref<16x24x8xf32, #tpu.memory_space<vmem>>, vector<16x14x8xf32>
    %16 = arith.maximumf %14, %15 : vector<16x14x8xf32>
    %c0_22 = arith.constant 0 : index
    %c9 = arith.constant 9 : index
    %c0_23 = arith.constant 0 : index
    %17 = vector.load %arg3[%c0_22, %c9, %c0_23] : memref<16x24x8xf32, #tpu.memory_space<vmem>>, vector<16x14x8xf32>
    %18 = arith.maximumf %16, %17 : vector<16x14x8xf32>
    %c0_24 = arith.constant 0 : index
    %c10 = arith.constant 10 : index
    %c0_25 = arith.constant 0 : index
    %19 = vector.load %arg3[%c0_24, %c10, %c0_25] : memref<16x24x8xf32, #tpu.memory_space<vmem>>, vector<16x14x8xf32>
    %20 = arith.maximumf %18, %19 : vector<16x14x8xf32>
    %c0_26 = arith.constant 0 : index
    %c1_27 = arith.constant 1 : index
    %c0_28 = arith.constant 0 : index
    %21 = vector.load %arg4[%c0_26, %c1_27, %c0_28] : memref<24x16x8xf32, #tpu.memory_space<vmem>>, vector<16x14x8xf32>
    tpu.vector_store %arg4[%c0_26, %c1_27, %c0_28], %20 {strides = array<i32>} : memref<24x16x8xf32, #tpu.memory_space<vmem>>, vector<16x14x8xf32>,
    %c0_29 = arith.constant 0 : index
    %c0_30 = arith.constant 0 : index
    %c0_31 = arith.constant 0 : index
    %22 = vector.load %arg3[%c0_29, %c0_30, %c0_31] : memref<16x24x8xf32, #tpu.memory_space<vmem>>, vector<16x1x8xf32>
    %c0_32 = arith.constant 0 : index
    %c1_33 = arith.constant 1 : index
    %c0_34 = arith.constant 0 : index
    %23 = vector.load %arg3[%c0_32, %c1_33, %c0_34] : memref<16x24x8xf32, #tpu.memory_space<vmem>>, vector<16x1x8xf32>
    %24 = arith.maximumf %22, %23 : vector<16x1x8xf32>
    %c0_35 = arith.constant 0 : index
    %c4_36 = arith.constant 4 : index
    %c0_37 = arith.constant 0 : index
    %25 = vector.load %arg3[%c0_35, %c4_36, %c0_37] : memref<16x24x8xf32, #tpu.memory_space<vmem>>, vector<16x1x8xf32>
    %26 = arith.maximumf %24, %25 : vector<16x1x8xf32>
    %c0_38 = arith.constant 0 : index
    %c5_39 = arith.constant 5 : index
    %c0_40 = arith.constant 0 : index
    %27 = vector.load %arg3[%c0_38, %c5_39, %c0_40] : memref<16x24x8xf32, #tpu.memory_space<vmem>>, vector<16x1x8xf32>
    %28 = arith.maximumf %26, %27 : vector<16x1x8xf32>
    %c0_41 = arith.constant 0 : index
    %c8_42 = arith.constant 8 : index
    %c0_43 = arith.constant 0 : index
    %29 = vector.load %arg3[%c0_41, %c8_42, %c0_43] : memref<16x24x8xf32, #tpu.memory_space<vmem>>, vector<16x1x8xf32>
    %30 = arith.maximumf %28, %29 : vector<16x1x8xf32>
    %c0_44 = arith.constant 0 : index
    %c9_45 = arith.constant 9 : index
    %c0_46 = arith.constant 0 : index
    %31 = vector.load %arg3[%c0_44, %c9_45, %c0_46] : memref<16x24x8xf32, #tpu.memory_space<vmem>>, vector<16x1x8xf32>
    %32 = arith.maximumf %30, %31 : vector<16x1x8xf32>
    %c0_47 = arith.constant 0 : index
    %c0_48 = arith.constant 0 : index
    %c0_49 = arith.constant 0 : index
    %33 = vector.load %arg4[%c0_47, %c0_48, %c0_49] : memref<24x16x8xf32, #tpu.memory_space<vmem>>, vector<16x1x8xf32>
    tpu.vector_store %arg4[%c0_47, %c0_48, %c0_49], %32 {strides = array<i32>} : memref<24x16x8xf32, #tpu.memory_space<vmem>>, vector<16x1x8xf32>,
    %c0_50 = arith.constant 0 : index
    %c14 = arith.constant 14 : index
    %c0_51 = arith.constant 0 : index
    %34 = vector.load %arg3[%c0_50, %c14, %c0_51] : memref<16x24x8xf32, #tpu.memory_space<vmem>>, vector<16x1x8xf32>
    %c0_52 = arith.constant 0 : index
    %c15 = arith.constant 15 : index
    %c0_53 = arith.constant 0 : index
    %35 = vector.load %arg3[%c0_52, %c15, %c0_53] : memref<16x24x8xf32, #tpu.memory_space<vmem>>, vector<16x1x8xf32>
    %36 = arith.maximumf %34, %35 : vector<16x1x8xf32>
    %c0_54 = arith.constant 0 : index
    %c18 = arith.constant 18 : index
    %c0_55 = arith.constant 0 : index
    %37 = vector.load %arg3[%c0_54, %c18, %c0_55] : memref<16x24x8xf32, #tpu.memory_space<vmem>>, vector<16x1x8xf32>
    %38 = arith.maximumf %36, %37 : vector<16x1x8xf32>
    %c0_56 = arith.constant 0 : index
    %c19 = arith.constant 19 : index
    %c0_57 = arith.constant 0 : index
    %39 = vector.load %arg3[%c0_56, %c19, %c0_57] : memref<16x24x8xf32, #tpu.memory_space<vmem>>, vector<16x1x8xf32>
    %40 = arith.maximumf %38, %39 : vector<16x1x8xf32>
    %c0_58 = arith.constant 0 : index
    %c22 = arith.constant 22 : index
    %c0_59 = arith.constant 0 : index
    %41 = vector.load %arg3[%c0_58, %c22, %c0_59] : memref<16x24x8xf32, #tpu.memory_space<vmem>>, vector<16x1x8xf32>
    %42 = arith.maximumf %40, %41 : vector<16x1x8xf32>
    %c0_60 = arith.constant 0 : index
    %c23 = arith.constant 23 : index
    %c0_61 = arith.constant 0 : index
    %43 = vector.load %arg3[%c0_60, %c23, %c0_61] : memref<16x24x8xf32, #tpu.memory_space<vmem>>, vector<16x1x8xf32>
    %44 = arith.maximumf %42, %43 : vector<16x1x8xf32>
    %c0_62 = arith.constant 0 : index
    %c15_63 = arith.constant 15 : index
    %c0_64 = arith.constant 0 : index
    %45 = vector.load %arg4[%c0_62, %c15_63, %c0_64] : memref<24x16x8xf32, #tpu.memory_space<vmem>>, vector<16x1x8xf32>
    tpu.vector_store %arg4[%c0_62, %c15_63, %c0_64], %44 {strides = array<i32>} : memref<24x16x8xf32, #tpu.memory_space<vmem>>, vector<16x1x8xf32>,
    %cst_65 = arith.constant 0.000000e+00 : f32
    %46 = vector.broadcast %cst_65 : f32 to vector<8x16x8xf32>
    %c16_66 = arith.constant 16 : index
    %c0_67 = arith.constant 0 : index
    %c0_68 = arith.constant 0 : index
    %47 = vector.load %arg4[%c16_66, %c0_67, %c0_68] : memref<24x16x8xf32, #tpu.memory_space<vmem>>, vector<8x16x8xf32>
    tpu.vector_store %arg4[%c16_66, %c0_67, %c0_68], %46 {strides = array<i32>} : memref<24x16x8xf32, #tpu.memory_space<vmem>>, vector<8x16x8xf32>,
    %c0_69 = arith.constant 0 : index
    %c0_70 = arith.constant 0 : index
    %c0_71 = arith.constant 0 : index
    %48 = vector.load %arg4[%c0_69, %c0_70, %c0_71] : memref<24x16x8xf32, #tpu.memory_space<vmem>>, vector<14x16x8xf32>
    %c1_72 = arith.constant 1 : index
    %c0_73 = arith.constant 0 : index
    %c0_74 = arith.constant 0 : index
    %49 = vector.load %arg4[%c1_72, %c0_73, %c0_74] : memref<24x16x8xf32, #tpu.memory_space<vmem>>, vector<14x16x8xf32>
    %50 = arith.maximumf %48, %49 : vector<14x16x8xf32>
    %c2_75 = arith.constant 2 : index
    %c0_76 = arith.constant 0 : index
    %c0_77 = arith.constant 0 : index
    %51 = vector.load %arg4[%c2_75, %c0_76, %c0_77] : memref<24x16x8xf32, #tpu.memory_space<vmem>>, vector<14x16x8xf32>
    %52 = arith.maximumf %50, %51 : vector<14x16x8xf32>
    %c4_78 = arith.constant 4 : index
    %c0_79 = arith.constant 0 : index
    %c0_80 = arith.constant 0 : index
    %53 = vector.load %arg4[%c4_78, %c0_79, %c0_80] : memref<24x16x8xf32, #tpu.memory_space<vmem>>, vector<14x16x8xf32>
    %54 = arith.maximumf %52, %53 : vector<14x16x8xf32>
    %c5_81 = arith.constant 5 : index
    %c0_82 = arith.constant 0 : index
    %c0_83 = arith.constant 0 : index
    %55 = vector.load %arg4[%c5_81, %c0_82, %c0_83] : memref<24x16x8xf32, #tpu.memory_space<vmem>>, vector<14x16x8xf32>
    %56 = arith.maximumf %54, %55 : vector<14x16x8xf32>
    %c6_84 = arith.constant 6 : index
    %c0_85 = arith.constant 0 : index
    %c0_86 = arith.constant 0 : index
    %57 = vector.load %arg4[%c6_84, %c0_85, %c0_86] : memref<24x16x8xf32, #tpu.memory_space<vmem>>, vector<14x16x8xf32>
    %58 = arith.maximumf %56, %57 : vector<14x16x8xf32>
    %c8_87 = arith.constant 8 : index
    %c0_88 = arith.constant 0 : index
    %c0_89 = arith.constant 0 : index
    %59 = vector.load %arg4[%c8_87, %c0_88, %c0_89] : memref<24x16x8xf32, #tpu.memory_space<vmem>>, vector<14x16x8xf32>
    %60 = arith.maximumf %58, %59 : vector<14x16x8xf32>
    %c9_90 = arith.constant 9 : index
    %c0_91 = arith.constant 0 : index
    %c0_92 = arith.constant 0 : index
    %61 = vector.load %arg4[%c9_90, %c0_91, %c0_92] : memref<24x16x8xf32, #tpu.memory_space<vmem>>, vector<14x16x8xf32>
    %62 = arith.maximumf %60, %61 : vector<14x16x8xf32>
    %c10_93 = arith.constant 10 : index
    %c0_94 = arith.constant 0 : index
    %c0_95 = arith.constant 0 : index
    %63 = vector.load %arg4[%c10_93, %c0_94, %c0_95] : memref<24x16x8xf32, #tpu.memory_space<vmem>>, vector<14x16x8xf32>
    %64 = arith.maximumf %62, %63 : vector<14x16x8xf32>
    %c1_96 = arith.constant 1 : index
    %c0_97 = arith.constant 0 : index
    %c0_98 = arith.constant 0 : index
    %65 = vector.load %arg2[%c1_96, %c0_97, %c0_98] : memref<16x16x8xf32, #tpu.memory_space<vmem>>, vector<14x16x8xf32>
    tpu.vector_store %arg2[%c1_96, %c0_97, %c0_98], %64 {strides = array<i32>} : memref<16x16x8xf32, #tpu.memory_space<vmem>>, vector<14x16x8xf32>,
    %c0_99 = arith.constant 0 : index
    %c0_100 = arith.constant 0 : index
    %c0_101 = arith.constant 0 : index
    %66 = vector.load %arg4[%c0_99, %c0_100, %c0_101] : memref<24x16x8xf32, #tpu.memory_space<vmem>>, vector<1x16x8xf32>
    %c1_102 = arith.constant 1 : index
    %c0_103 = arith.constant 0 : index
    %c0_104 = arith.constant 0 : index
    %67 = vector.load %arg4[%c1_102, %c0_103, %c0_104] : memref<24x16x8xf32, #tpu.memory_space<vmem>>, vector<1x16x8xf32>
    %68 = arith.maximumf %66, %67 : vector<1x16x8xf32>
    %c4_105 = arith.constant 4 : index
    %c0_106 = arith.constant 0 : index
    %c0_107 = arith.constant 0 : index
    %69 = vector.load %arg4[%c4_105, %c0_106, %c0_107] : memref<24x16x8xf32, #tpu.memory_space<vmem>>, vector<1x16x8xf32>
    %70 = arith.maximumf %68, %69 : vector<1x16x8xf32>
    %c5_108 = arith.constant 5 : index
    %c0_109 = arith.constant 0 : index
    %c0_110 = arith.constant 0 : index
    %71 = vector.load %arg4[%c5_108, %c0_109, %c0_110] : memref<24x16x8xf32, #tpu.memory_space<vmem>>, vector<1x16x8xf32>
    %72 = arith.maximumf %70, %71 : vector<1x16x8xf32>
    %c8_111 = arith.constant 8 : index
    %c0_112 = arith.constant 0 : index
    %c0_113 = arith.constant 0 : index
    %73 = vector.load %arg4[%c8_111, %c0_112, %c0_113] : memref<24x16x8xf32, #tpu.memory_space<vmem>>, vector<1x16x8xf32>
    %74 = arith.maximumf %72, %73 : vector<1x16x8xf32>
    %c9_114 = arith.constant 9 : index
    %c0_115 = arith.constant 0 : index
    %c0_116 = arith.constant 0 : index
    %75 = vector.load %arg4[%c9_114, %c0_115, %c0_116] : memref<24x16x8xf32, #tpu.memory_space<vmem>>, vector<1x16x8xf32>
    %76 = arith.maximumf %74, %75 : vector<1x16x8xf32>
    %c0_117 = arith.constant 0 : index
    %c0_118 = arith.constant 0 : index
    %c0_119 = arith.constant 0 : index
    %77 = vector.load %arg2[%c0_117, %c0_118, %c0_119] : memref<16x16x8xf32, #tpu.memory_space<vmem>>, vector<1x16x8xf32>
    tpu.vector_store %arg2[%c0_117, %c0_118, %c0_119], %76 {strides = array<i32>} : memref<16x16x8xf32, #tpu.memory_space<vmem>>, vector<1x16x8xf32>,
    %c14_120 = arith.constant 14 : index
    %c0_121 = arith.constant 0 : index
    %c0_122 = arith.constant 0 : index
    %78 = vector.load %arg4[%c14_120, %c0_121, %c0_122] : memref<24x16x8xf32, #tpu.memory_space<vmem>>, vector<1x16x8xf32>
    %c15_123 = arith.constant 15 : index
    %c0_124 = arith.constant 0 : index
    %c0_125 = arith.constant 0 : index
    %79 = vector.load %arg4[%c15_123, %c0_124, %c0_125] : memref<24x16x8xf32, #tpu.memory_space<vmem>>, vector<1x16x8xf32>
    %80 = arith.maximumf %78, %79 : vector<1x16x8xf32>
    %c18_126 = arith.constant 18 : index
    %c0_127 = arith.constant 0 : index
    %c0_128 = arith.constant 0 : index
    %81 = vector.load %arg4[%c18_126, %c0_127, %c0_128] : memref<24x16x8xf32, #tpu.memory_space<vmem>>, vector<1x16x8xf32>
    %82 = arith.maximumf %80, %81 : vector<1x16x8xf32>
    %c19_129 = arith.constant 19 : index
    %c0_130 = arith.constant 0 : index
    %c0_131 = arith.constant 0 : index
    %83 = vector.load %arg4[%c19_129, %c0_130, %c0_131] : memref<24x16x8xf32, #tpu.memory_space<vmem>>, vector<1x16x8xf32>
    %84 = arith.maximumf %82, %83 : vector<1x16x8xf32>
    %c22_132 = arith.constant 22 : index
    %c0_133 = arith.constant 0 : index
    %c0_134 = arith.constant 0 : index
    %85 = vector.load %arg4[%c22_132, %c0_133, %c0_134] : memref<24x16x8xf32, #tpu.memory_space<vmem>>, vector<1x16x8xf32>
    %86 = arith.maximumf %84, %85 : vector<1x16x8xf32>
    %c23_135 = arith.constant 23 : index
    %c0_136 = arith.constant 0 : index
    %c0_137 = arith.constant 0 : index
    %87 = vector.load %arg4[%c23_135, %c0_136, %c0_137] : memref<24x16x8xf32, #tpu.memory_space<vmem>>, vector<1x16x8xf32>
    %88 = arith.maximumf %86, %87 : vector<1x16x8xf32>
    %c15_138 = arith.constant 15 : index
    %c0_139 = arith.constant 0 : index
    %c0_140 = arith.constant 0 : index
    %89 = vector.load %arg2[%c15_138, %c0_139, %c0_140] : memref<16x16x8xf32, #tpu.memory_space<vmem>>, vector<1x16x8xf32>
    tpu.vector_store %arg2[%c15_138, %c0_139, %c0_140], %88 {strides = array<i32>} : memref<16x16x8xf32, #tpu.memory_space<vmem>>, vector<1x16x8xf32>,
    return
  }
  func.func @transform_0(%arg0: i32) -> (i32, i32, i32) {
    %c0_i32 = arith.constant 0 : i32
    %c0_i32_0 = arith.constant 0 : i32
    %c0_i32_1 = arith.constant 0 : i32
    return %c0_i32, %c0_i32_0, %arg0 : i32, i32, i32
  }
  func.func @transform_1(%arg0: i32) -> (i32, i32, i32) {
    %c0_i32 = arith.constant 0 : i32
    %c0_i32_0 = arith.constant 0 : i32
    %c0_i32_1 = arith.constant 0 : i32
    return %c0_i32, %c0_i32_0, %arg0 : i32, i32, i32
  }
}

</mosaic_0001>

<llo_original>
// kernel: tpu_custom_call.1
$region0: #{tpu_custom_call.1}
  #allocation0 [shape = 'u32[]', space=smem, size = 0x4, offset = 0x4, fixed_abs, tag = 'smem constant byte address 0x4 - core index']
  #allocation1 [shape = 'u32[144,128]{1,0:T(1,128)}', space=vmem, size = 0x12000, scoped, tag = 'internal scratch']
  #allocation2 [shape = 'f32[16,24,8]{2,1,0:T(8,128)}', space=vmem, size = 0x30000, scoped, tag = 'scratch operand']
  #allocation3 [shape = 'f32[24,16,8]{2,1,0:T(8,128)}', space=vmem, size = 0x30000, scoped, tag = 'scratch operand']
  %s0 = inlined_call_operand.vmem [shape: f32[16,16,8], index: 0, kind: input, shape index: {}]
  %s1 = inlined_call_operand.vmem [shape: f32[16,16,8], index: 1, kind: output, shape index: {}]
  %s2 = sld [smem:[#allocation0]]
  $region14: #{tpu_custom_call.1} parent=0
    _
  %s4 = ssub.s32 1, %s2
  %s5 = scalar_select 0, %s4, %s2
  // Predicated region
  $region2: #{tpu_custom_call.1} parent=0 // pred_check
    _
  $region3: #{tpu_custom_call.1} parent=0 // pred_check_branch
    %7 = sbr.rel (0) target = $region5
  $region4: #{tpu_custom_call.1} parent=0 // pred_region
    _
  $region5: #{tpu_custom_call.1} parent=0 // pred_fallthru
    _
  %v8 = vld [vmem:[%s0] sm:$0xff]
  %v9 = vld [vmem:[%s0 + $0x8] sm:$0xff]
  %v10 = vld [vmem:[%s0 + $0x10] sm:$0xff]
  %v11 = vld [vmem:[%s0 + $0x18] sm:$0xff]
  %v12 = vld [vmem:[%s0 + $0x20] sm:$0xff]
  %v13 = vld [vmem:[%s0 + $0x28] sm:$0xff]
  %v14 = vld [vmem:[%s0 + $0x30] sm:$0xff]
  %v15 = vld [vmem:[%s0 + $0x38] sm:$0xff]
  %v16 = vld [vmem:[%s0 + $0x40] sm:$0xff]
  %v17 = vld [vmem:[%s0 + $0x48] sm:$0xff]
  %v18 = vld [vmem:[%s0 + $0x50] sm:$0xff]
  %v19 = vld [vmem:[%s0 + $0x58] sm:$0xff]
  %v20 = vld [vmem:[%s0 + $0x60] sm:$0xff]
  %v21 = vld [vmem:[%s0 + $0x68] sm:$0xff]
  %v22 = vld [vmem:[%s0 + $0x70] sm:$0xff]
  %v23 = vld [vmem:[%s0 + $0x78] sm:$0xff]
  %v24 = vld [vmem:[%s0 + $0x80] sm:$0xff]
  %v25 = vld [vmem:[%s0 + $0x88] sm:$0xff]
  %v26 = vld [vmem:[%s0 + $0x90] sm:$0xff]
  %v27 = vld [vmem:[%s0 + $0x98] sm:$0xff]
  %v28 = vld [vmem:[%s0 + $0xa0] sm:$0xff]
  %v29 = vld [vmem:[%s0 + $0xa8] sm:$0xff]
  %v30 = vld [vmem:[%s0 + $0xb0] sm:$0xff]
  %v31 = vld [vmem:[%s0 + $0xb8] sm:$0xff]
  %v32 = vld [vmem:[%s0 + $0xc0] sm:$0xff]
  %v33 = vld [vmem:[%s0 + $0xc8] sm:$0xff]
  %v34 = vld [vmem:[%s0 + $0xd0] sm:$0xff]
  %v35 = vld [vmem:[%s0 + $0xd8] sm:$0xff]
  %v36 = vld [vmem:[%s0 + $0xe0] sm:$0xff]
  %v37 = vld [vmem:[%s0 + $0xe8] sm:$0xff]
  %v38 = vld [vmem:[%s0 + $0xf0] sm:$0xff]
  %v39 = vld [vmem:[%s0 + $0xf8] sm:$0xff]
  %vm40 = vcmask 64512
  %41 = vst.msk [vmem:[#allocation2] sm:$0xff] %vm40, %v8
  %42 = vst.msk [vmem:[#allocation2 + $0x8] sm:$0xff] %vm40, %v9
  %43 = vst.msk [vmem:[#allocation2 + $0x18] sm:$0xff] %vm40, %v10
  %44 = vst.msk [vmem:[#allocation2 + $0x20] sm:$0xff] %vm40, %v11
  %45 = vst.msk [vmem:[#allocation2 + $0x30] sm:$0xff] %vm40, %v12
  %46 = vst.msk [vmem:[#allocation2 + $0x38] sm:$0xff] %vm40, %v13
  %47 = vst.msk [vmem:[#allocation2 + $0x48] sm:$0xff] %vm40, %v14
  %48 = vst.msk [vmem:[#allocation2 + $0x50] sm:$0xff] %vm40, %v15
  %49 = vst.msk [vmem:[#allocation2 + $0x60] sm:$0xff] %vm40, %v16
  %50 = vst.msk [vmem:[#allocation2 + $0x68] sm:$0xff] %vm40, %v17
  %51 = vst.msk [vmem:[#allocation2 + $0x78] sm:$0xff] %vm40, %v18
  %52 = vst.msk [vmem:[#allocation2 + $0x80] sm:$0xff] %vm40, %v19
  %53 = vst.msk [vmem:[#allocation2 + $0x90] sm:$0xff] %vm40, %v20
  %54 = vst.msk [vmem:[#allocation2 + $0x98] sm:$0xff] %vm40, %v21
  %55 = vst.msk [vmem:[#allocation2 + $0xa8] sm:$0xff] %vm40, %v22
  %56 = vst.msk [vmem:[#allocation2 + $0xb0] sm:$0xff] %vm40, %v23
  %57 = vst.msk [vmem:[#allocation2 + $0xc0] sm:$0xff] %vm40, %v24
  %58 = vst.msk [vmem:[#allocation2 + $0xc8] sm:$0xff] %vm40, %v25
  %59 = vst.msk [vmem:[#allocation2 + $0xd8] sm:$0xff] %vm40, %v26
  %60 = vst.msk [vmem:[#allocation2 + $0xe0] sm:$0xff] %vm40, %v27
  %61 = vst.msk [vmem:[#allocation2 + $0xf0] sm:$0xff] %vm40, %v28
  %62 = vst.msk [vmem:[#allocation2 + $0xf8] sm:$0xff] %vm40, %v29
  %63 = vst.msk [vmem:[#allocation2 + $0x108] sm:$0xff] %vm40, %v30
  %64 = vst.msk [vmem:[#allocation2 + $0x110] sm:$0xff] %vm40, %v31
  %65 = vst.msk [vmem:[#allocation2 + $0x120] sm:$0xff] %vm40, %v32
  %66 = vst.msk [vmem:[#allocation2 + $0x128] sm:$0xff] %vm40, %v33
  %67 = vst.msk [vmem:[#allocation2 + $0x138] sm:$0xff] %vm40, %v34
  %68 = vst.msk [vmem:[#allocation2 + $0x140] sm:$0xff] %vm40, %v35
  %69 = vst.msk [vmem:[#allocation2 + $0x150] sm:$0xff] %vm40, %v36
  %70 = vst.msk [vmem:[#allocation2 + $0x158] sm:$0xff] %vm40, %v37
  %71 = vst.msk [vmem:[#allocation2 + $0x168] sm:$0xff] %vm40, %v38
  %72 = vst.msk [vmem:[#allocation2 + $0x170] sm:$0xff] %vm40, %v39
  %73 = vst.msk [vmem:[#allocation2 + $0x10] sm:$0xff] %vm40, 0.0
  %74 = vst.msk [vmem:[#allocation2 + $0x28] sm:$0xff] %vm40, 0.0
  %75 = vst.msk [vmem:[#allocation2 + $0x40] sm:$0xff] %vm40, 0.0
  %76 = vst.msk [vmem:[#allocation2 + $0x58] sm:$0xff] %vm40, 0.0
  %77 = vst.msk [vmem:[#allocation2 + $0x70] sm:$0xff] %vm40, 0.0
  %78 = vst.msk [vmem:[#allocation2 + $0x88] sm:$0xff] %vm40, 0.0
  %79 = vst.msk [vmem:[#allocation2 + $0xa0] sm:$0xff] %vm40, 0.0
  %80 = vst.msk [vmem:[#allocation2 + $0xb8] sm:$0xff] %vm40, 0.0
  %81 = vst.msk [vmem:[#allocation2 + $0xd0] sm:$0xff] %vm40, 0.0
  %82 = vst.msk [vmem:[#allocation2 + $0xe8] sm:$0xff] %vm40, 0.0
  %83 = vst.msk [vmem:[#allocation2 + $0x100] sm:$0xff] %vm40, 0.0
  %84 = vst.msk [vmem:[#allocation2 + $0x118] sm:$0xff] %vm40, 0.0
  %85 = vst.msk [vmem:[#allocation2 + $0x130] sm:$0xff] %vm40, 0.0
  %86 = vst.msk [vmem:[#allocation2 + $0x148] sm:$0xff] %vm40, 0.0
  %87 = vst.msk [vmem:[#allocation2 + $0x160] sm:$0xff] %vm40, 0.0
  %88 = vst.msk [vmem:[#allocation2 + $0x178] sm:$0xff] %vm40, 0.0
  %v89 = vld [vmem:[#allocation2] sm:$0xff]
  %v90 = vld [vmem:[#allocation2 + $0x8] sm:$0x3f]
  %v91 = vld [vmem:[#allocation2 + $0x18] sm:$0xff]
  %v92 = vld [vmem:[#allocation2 + $0x20] sm:$0x3f]
  %v93 = vld [vmem:[#allocation2 + $0x30] sm:$0xff]
  %v94 = vld [vmem:[#allocation2 + $0x38] sm:$0x3f]
  %v95 = vld [vmem:[#allocation2 + $0x48] sm:$0xff]
  %v96 = vld [vmem:[#allocation2 + $0x50] sm:$0x3f]
  %v97 = vld [vmem:[#allocation2 + $0x60] sm:$0xff]
  %v98 = vld [vmem:[#allocation2 + $0x68] sm:$0x3f]
  %v99 = vld [vmem:[#allocation2 + $0x78] sm:$0xff]
  %v100 = vld [vmem:[#allocation2 + $0x80] sm:$0x3f]
  %v101 = vld [vmem:[#allocation2 + $0x90] sm:$0xff]
  %v102 = vld [vmem:[#allocation2 + $0x98] sm:$0x3f]
  %v103 = vld [vmem:[#allocation2 + $0xa8] sm:$0xff]
  %v104 = vld [vmem:[#allocation2 + $0xb0] sm:$0x3f]
  %v105 = vld [vmem:[#allocation2 + $0xc0] sm:$0xff]
  %v106 = vld [vmem:[#allocation2 + $0xc8] sm:$0x3f]
  %v107 = vld [vmem:[#allocation2 + $0xd8] sm:$0xff]
  %v108 = vld [vmem:[#allocation2 + $0xe0] sm:$0x3f]
  %v109 = vld [vmem:[#allocation2 + $0xf0] sm:$0xff]
  %v110 = vld [vmem:[#allocation2 + $0xf8] sm:$0x3f]
  %v111 = vld [vmem:[#allocation2 + $0x108] sm:$0xff]
  %v112 = vld [vmem:[#allocation2 + $0x110] sm:$0x3f]
  %v113 = vld [vmem:[#allocation2 + $0x120] sm:$0xff]
  %v114 = vld [vmem:[#allocation2 + $0x128] sm:$0x3f]
  %v115 = vld [vmem:[#allocation2 + $0x138] sm:$0xff]
  %v116 = vld [vmem:[#allocation2 + $0x140] sm:$0x3f]
  %v117 = vld [vmem:[#allocation2 + $0x150] sm:$0xff]
  %v118 = vld [vmem:[#allocation2 + $0x158] sm:$0x3f]
  %v119 = vld [vmem:[#allocation2 + $0x168] sm:$0xff]
  %v120 = vld [vmem:[#allocation2 + $0x170] sm:$0x3f]
  %v121 = vld [vmem:[#allocation2 + $0x1] sm:$0xff]
  %v122 = vld [vmem:[#allocation2 + $0x9] sm:$0x3f]
  %v123 = vld [vmem:[#allocation2 + $0x19] sm:$0xff]
  %v124 = vld [vmem:[#allocation2 + $0x21] sm:$0x3f]
  %v125 = vld [vmem:[#allocation2 + $0x31] sm:$0xff]
  %v126 = vld [vmem:[#allocation2 + $0x39] sm:$0x3f]
  %v127 = vld [vmem:[#allocation2 + $0x49] sm:$0xff]
  %v128 = vld [vmem:[#allocation2 + $0x51] sm:$0x3f]
  %v129 = vld [vmem:[#allocation2 + $0x61] sm:$0xff]
  %v130 = vld [vmem:[#allocation2 + $0x69] sm:$0x3f]
  %v131 = vld [vmem:[#allocation2 + $0x79] sm:$0xff]
  %v132 = vld [vmem:[#allocation2 + $0x81] sm:$0x3f]
  %v133 = vld [vmem:[#allocation2 + $0x91] sm:$0xff]
  %v134 = vld [vmem:[#allocation2 + $0x99] sm:$0x3f]
  %v135 = vld [vmem:[#allocation2 + $0xa9] sm:$0xff]
  %v136 = vld [vmem:[#allocation2 + $0xb1] sm:$0x3f]
  %v137 = vld [vmem:[#allocation2 + $0xc1] sm:$0xff]
  %v138 = vld [vmem:[#allocation2 + $0xc9] sm:$0x3f]
  %v139 = vld [vmem:[#allocation2 + $0xd9] sm:$0xff]
  %v140 = vld [vmem:[#allocation2 + $0xe1] sm:$0x3f]
  %v141 = vld [vmem:[#allocation2 + $0xf1] sm:$0xff]
  %v142 = vld [vmem:[#allocation2 + $0xf9] sm:$0x3f]
  %v143 = vld [vmem:[#allocation2 + $0x109] sm:$0xff]
  %v144 = vld [vmem:[#allocation2 + $0x111] sm:$0x3f]
  %v145 = vld [vmem:[#allocation2 + $0x121] sm:$0xff]
  %v146 = vld [vmem:[#allocation2 + $0x129] sm:$0x3f]
  %v147 = vld [vmem:[#allocation2 + $0x139] sm:$0xff]
  %v148 = vld [vmem:[#allocation2 + $0x141] sm:$0x3f]
  %v149 = vld [vmem:[#allocation2 + $0x151] sm:$0xff]
  %v150 = vld [vmem:[#allocation2 + $0x159] sm:$0x3f]
  %v151 = vld [vmem:[#allocation2 + $0x169] sm:$0xff]
  %v152 = vld [vmem:[#allocation2 + $0x171] sm:$0x3f]
  %v153 = vmax.f32 %v89, %v121
  %v154 = vmax.f32 %v90, %v122
  %v155 = vmax.f32 %v91, %v123
  %v156 = vmax.f32 %v92, %v124
  %v157 = vmax.f32 %v93, %v125
  %v158 = vmax.f32 %v94, %v126
  %v159 = vmax.f32 %v95, %v127
  %v160 = vmax.f32 %v96, %v128
  %v161 = vmax.f32 %v97, %v129
  %v162 = vmax.f32 %v98, %v130
  %v163 = vmax.f32 %v99, %v131
  %v164 = vmax.f32 %v100, %v132
  %v165 = vmax.f32 %v101, %v133
  %v166 = vmax.f32 %v102, %v134
  %v167 = vmax.f32 %v103, %v135
  %v168 = vmax.f32 %v104, %v136
  %v169 = vmax.f32 %v105, %v137
  %v170 = vmax.f32 %v106, %v138
  %v171 = vmax.f32 %v107, %v139
  %v172 = vmax.f32 %v108, %v140
  %v173 = vmax.f32 %v109, %v141
  %v174 = vmax.f32 %v110, %v142
  %v175 = vmax.f32 %v111, %v143
  %v176 = vmax.f32 %v112, %v144
  %v177 = vmax.f32 %v113, %v145
  %v178 = vmax.f32 %v114, %v146
  %v179 = vmax.f32 %v115, %v147
  %v180 = vmax.f32 %v116, %v148
  %v181 = vmax.f32 %v117, %v149
  %v182 = vmax.f32 %v118, %v150
  %v183 = vmax.f32 %v119, %v151
  %v184 = vmax.f32 %v120, %v152
  %v185 = vld [vmem:[#allocation2 + $0x2] sm:$0xff]
  %v186 = vld [vmem:[#allocation2 + $0xa] sm:$0x3f]
  %v187 = vld [vmem:[#allocation2 + $0x1a] sm:$0xff]
  %v188 = vld [vmem:[#allocation2 + $0x22] sm:$0x3f]
  %v189 = vld [vmem:[#allocation2 + $0x32] sm:$0xff]
  %v190 = vld [vmem:[#allocation2 + $0x3a] sm:$0x3f]
  %v191 = vld [vmem:[#allocation2 + $0x4a] sm:$0xff]
  %v192 = vld [vmem:[#allocation2 + $0x52] sm:$0x3f]
  %v193 = vld [vmem:[#allocation2 + $0x62] sm:$0xff]
  %v194 = vld [vmem:[#allocation2 + $0x6a] sm:$0x3f]
  %v195 = vld [vmem:[#allocation2 + $0x7a] sm:$0xff]
  %v196 = vld [vmem:[#allocation2 + $0x82] sm:$0x3f]
  %v197 = vld [vmem:[#allocation2 + $0x92] sm:$0xff]
  %v198 = vld [vmem:[#allocation2 + $0x9a] sm:$0x3f]
  %v199 = vld [vmem:[#allocation2 + $0xaa] sm:$0xff]
  %v200 = vld [vmem:[#allocation2 + $0xb2] sm:$0x3f]
  %v201 = vld [vmem:[#allocation2 + $0xc2] sm:$0xff]
  %v202 = vld [vmem:[#allocation2 + $0xca] sm:$0x3f]
  %v203 = vld [vmem:[#allocation2 + $0xda] sm:$0xff]
  %v204 = vld [vmem:[#allocation2 + $0xe2] sm:$0x3f]
  %v205 = vld [vmem:[#allocation2 + $0xf2] sm:$0xff]
  %v206 = vld [vmem:[#allocation2 + $0xfa] sm:$0x3f]
  %v207 = vld [vmem:[#allocation2 + $0x10a] sm:$0xff]
  %v208 = vld [vmem:[#allocation2 + $0x112] sm:$0x3f]
  %v209 = vld [vmem:[#allocation2 + $0x122] sm:$0xff]
  %v210 = vld [vmem:[#allocation2 + $0x12a] sm:$0x3f]
  %v211 = vld [vmem:[#allocation2 + $0x13a] sm:$0xff]
  %v212 = vld [vmem:[#allocation2 + $0x142] sm:$0x3f]
  %v213 = vld [vmem:[#allocation2 + $0x152] sm:$0xff]
  %v214 = vld [vmem:[#allocation2 + $0x15a] sm:$0x3f]
  %v215 = vld [vmem:[#allocation2 + $0x16a] sm:$0xff]
  %v216 = vld [vmem:[#allocation2 + $0x172] sm:$0x3f]
  %v217 = vmax.f32 %v153, %v185
  %v218 = vmax.f32 %v154, %v186
  %v219 = vmax.f32 %v155, %v187
  %v220 = vmax.f32 %v156, %v188
  %v221 = vmax.f32 %v157, %v189
  %v222 = vmax.f32 %v158, %v190
  %v223 = vmax.f32 %v159, %v191
  %v224 = vmax.f32 %v160, %v192
  %v225 = vmax.f32 %v161, %v193
  %v226 = vmax.f32 %v162, %v194
  %v227 = vmax.f32 %v163, %v195
  %v228 = vmax.f32 %v164, %v196
  %v229 = vmax.f32 %v165, %v197
  %v230 = vmax.f32 %v166, %v198
  %v231 = vmax.f32 %v167, %v199
  %v232 = vmax.f32 %v168, %v200
  %v233 = vmax.f32 %v169, %v201
  %v234 = vmax.f32 %v170, %v202
  %v235 = vmax.f32 %v171, %v203
  %v236 = vmax.f32 %v172, %v204
  %v237 = vmax.f32 %v173, %v205
  %v238 = vmax.f32 %v174, %v206
  %v239 = vmax.f32 %v175, %v207
  %v240 = vmax.f32 %v176, %v208
  %v241 = vmax.f32 %v177, %v209
  %v242 = vmax.f32 %v178, %v210
  %v243 = vmax.f32 %v179, %v211
  %v244 = vmax.f32 %v180, %v212
  %v245 = vmax.f32 %v181, %v213
  %v246 = vmax.f32 %v182, %v214
  %v247 = vmax.f32 %v183, %v215
  %v248 = vmax.f32 %v184, %v216
  %v249 = vld [vmem:[#allocation2 + $0x4] sm:$0xff]
  %v250 = vld [vmem:[#allocation2 + $0xc] sm:$0x3f]
  %v251 = vld [vmem:[#allocation2 + $0x1c] sm:$0xff]
  %v252 = vld [vmem:[#allocation2 + $0x24] sm:$0x3f]
  %v253 = vld [vmem:[#allocation2 + $0x34] sm:$0xff]
  %v254 = vld [vmem:[#allocation2 + $0x3c] sm:$0x3f]
  %v255 = vld [vmem:[#allocation2 + $0x4c] sm:$0xff]
  %v256 = vld [vmem:[#allocation2 + $0x54] sm:$0x3f]
  %v257 = vld [vmem:[#allocation2 + $0x64] sm:$0xff]
  %v258 = vld [vmem:[#allocation2 + $0x6c] sm:$0x3f]
  %v259 = vld [vmem:[#allocation2 + $0x7c] sm:$0xff]
  %v260 = vld [vmem:[#allocation2 + $0x84] sm:$0x3f]
  %v261 = vld [vmem:[#allocation2 + $0x94] sm:$0xff]
  %v262 = vld [vmem:[#allocation2 + $0x9c] sm:$0x3f]
  %v263 = vld [vmem:[#allocation2 + $0xac] sm:$0xff]
  %v264 = vld [vmem:[#allocation2 + $0xb4] sm:$0x3f]
  %v265 = vld [vmem:[#allocation2 + $0xc4] sm:$0xff]
  %v266 = vld [vmem:[#allocation2 + $0xcc] sm:$0x3f]
  %v267 = vld [vmem:[#allocation2 + $0xdc] sm:$0xff]
  %v268 = vld [vmem:[#allocation2 + $0xe4] sm:$0x3f]
  %v269 = vld [vmem:[#allocation2 + $0xf4] sm:$0xff]
  %v270 = vld [vmem:[#allocation2 + $0xfc] sm:$0x3f]
  %v271 = vld [vmem:[#allocation2 + $0x10c] sm:$0xff]
  %v272 = vld [vmem:[#allocation2 + $0x114] sm:$0x3f]
  %v273 = vld [vmem:[#allocation2 + $0x124] sm:$0xff]
  %v274 = vld [vmem:[#allocation2 + $0x12c] sm:$0x3f]
  %v275 = vld [vmem:[#allocation2 + $0x13c] sm:$0xff]
  %v276 = vld [vmem:[#allocation2 + $0x144] sm:$0x3f]
  %v277 = vld [vmem:[#allocation2 + $0x154] sm:$0xff]
  %v278 = vld [vmem:[#allocation2 + $0x15c] sm:$0x3f]
  %v279 = vld [vmem:[#allocation2 + $0x16c] sm:$0xff]
  %v280 = vld [vmem:[#allocation2 + $0x174] sm:$0x3f]
  %v281 = vmax.f32 %v217, %v249
  %v282 = vmax.f32 %v218, %v250
  %v283 = vmax.f32 %v219, %v251
  %v284 = vmax.f32 %v220, %v252
  %v285 = vmax.f32 %v221, %v253
  %v286 = vmax.f32 %v222, %v254
  %v287 = vmax.f32 %v223, %v255
  %v288 = vmax.f32 %v224, %v256
  %v289 = vmax.f32 %v225, %v257
  %v290 = vmax.f32 %v226, %v258
  %v291 = vmax.f32 %v227, %v259
  %v292 = vmax.f32 %v228, %v260
  %v293 = vmax.f32 %v229, %v261
  %v294 = vmax.f32 %v230, %v262
  %v295 = vmax.f32 %v231, %v263
  %v296 = vmax.f32 %v232, %v264
  %v297 = vmax.f32 %v233, %v265
  %v298 = vmax.f32 %v234, %v266
  %v299 = vmax.f32 %v235, %v267
  %v300 = vmax.f32 %v236, %v268
  %v301 = vmax.f32 %v237, %v269
  %v302 = vmax.f32 %v238, %v270
  %v303 = vmax.f32 %v239, %v271
  %v304 = vmax.f32 %v240, %v272
  %v305 = vmax.f32 %v241, %v273
  %v306 = vmax.f32 %v242, %v274
  %v307 = vmax.f32 %v243, %v275
  %v308 = vmax.f32 %v244, %v276
  %v309 = vmax.f32 %v245, %v277
  %v310 = vmax.f32 %v246, %v278
  %v311 = vmax.f32 %v247, %v279
  %v312 = vmax.f32 %v248, %v280
  %v313 = vld [vmem:[#allocation2 + $0x5] sm:$0xff]
  %v314 = vld [vmem:[#allocation2 + $0xd] sm:$0x3f]
  %v315 = vld [vmem:[#allocation2 + $0x1d] sm:$0xff]
  %v316 = vld [vmem:[#allocation2 + $0x25] sm:$0x3f]
  %v317 = vld [vmem:[#allocation2 + $0x35] sm:$0xff]
  %v318 = vld [vmem:[#allocation2 + $0x3d] sm:$0x3f]
  %v319 = vld [vmem:[#allocation2 + $0x4d] sm:$0xff]
  %v320 = vld [vmem:[#allocation2 + $0x55] sm:$0x3f]
  %v321 = vld [vmem:[#allocation2 + $0x65] sm:$0xff]
  %v322 = vld [vmem:[#allocation2 + $0x6d] sm:$0x3f]
  %v323 = vld [vmem:[#allocation2 + $0x7d] sm:$0xff]
  %v324 = vld [vmem:[#allocation2 + $0x85] sm:$0x3f]
  %v325 = vld [vmem:[#allocation2 + $0x95] sm:$0xff]
  %v326 = vld [vmem:[#allocation2 + $0x9d] sm:$0x3f]
  %v327 = vld [vmem:[#allocation2 + $0xad] sm:$0xff]
  %v328 = vld [vmem:[#allocation2 + $0xb5] sm:$0x3f]
  %v329 = vld [vmem:[#allocation2 + $0xc5] sm:$0xff]
  %v330 = vld [vmem:[#allocation2 + $0xcd] sm:$0x3f]
  %v331 = vld [vmem:[#allocation2 + $0xdd] sm:$0xff]
  %v332 = vld [vmem:[#allocation2 + $0xe5] sm:$0x3f]
  %v333 = vld [vmem:[#allocation2 + $0xf5] sm:$0xff]
  %v334 = vld [vmem:[#allocation2 + $0xfd] sm:$0x3f]
  %v335 = vld [vmem:[#allocation2 + $0x10d] sm:$0xff]
  %v336 = vld [vmem:[#allocation2 + $0x115] sm:$0x3f]
  %v337 = vld [vmem:[#allocation2 + $0x125] sm:$0xff]
  %v338 = vld [vmem:[#allocation2 + $0x12d] sm:$0x3f]
  %v339 = vld [vmem:[#allocation2 + $0x13d] sm:$0xff]
  %v340 = vld [vmem:[#allocation2 + $0x145] sm:$0x3f]
  %v341 = vld [vmem:[#allocation2 + $0x155] sm:$0xff]
  %v342 = vld [vmem:[#allocation2 + $0x15d] sm:$0x3f]
  %v343 = vld [vmem:[#allocation2 + $0x16d] sm:$0xff]
  %v344 = vld [vmem:[#allocation2 + $0x175] sm:$0x3f]
  %v345 = vmax.f32 %v281, %v313
  %v346 = vmax.f32 %v282, %v314
  %v347 = vmax.f32 %v283, %v315
  %v348 = vmax.f32 %v284, %v316
  %v349 = vmax.f32 %v285, %v317
  %v350 = vmax.f32 %v286, %v318
  %v351 = vmax.f32 %v287, %v319
  %v352 = vmax.f32 %v288, %v320
  %v353 = vmax.f32 %v289, %v321
  %v354 = vmax.f32 %v290, %v322
  %v355 = vmax.f32 %v291, %v323
  %v356 = vmax.f32 %v292, %v324
  %v357 = vmax.f32 %v293, %v325
  %v358 = vmax.f32 %v294, %v326
  %v359 = vmax.f32 %v295, %v327
  %v360 = vmax.f32 %v296, %v328
  %v361 = vmax.f32 %v297, %v329
  %v362 = vmax.f32 %v298, %v330
  %v363 = vmax.f32 %v299, %v331
  %v364 = vmax.f32 %v300, %v332
  %v365 = vmax.f32 %v301, %v333
  %v366 = vmax.f32 %v302, %v334
  %v367 = vmax.f32 %v303, %v335
  %v368 = vmax.f32 %v304, %v336
  %v369 = vmax.f32 %v305, %v337
  %v370 = vmax.f32 %v306, %v338
  %v371 = vmax.f32 %v307, %v339
  %v372 = vmax.f32 %v308, %v340
  %v373 = vmax.f32 %v309, %v341
  %v374 = vmax.f32 %v310, %v342
  %v375 = vmax.f32 %v311, %v343
  %v376 = vmax.f32 %v312, %v344
  %v377 = vld [vmem:[#allocation2 + $0x6] sm:$0xff]
  %v378 = vld [vmem:[#allocation2 + $0xe] sm:$0x3f]
  %v379 = vld [vmem:[#allocation2 + $0x1e] sm:$0xff]
  %v380 = vld [vmem:[#allocation2 + $0x26] sm:$0x3f]
  %v381 = vld [vmem:[#allocation2 + $0x36] sm:$0xff]
  %v382 = vld [vmem:[#allocation2 + $0x3e] sm:$0x3f]
  %v383 = vld [vmem:[#allocation2 + $0x4e] sm:$0xff]
  %v384 = vld [vmem:[#allocation2 + $0x56] sm:$0x3f]
  %v385 = vld [vmem:[#allocation2 + $0x66] sm:$0xff]
  %v386 = vld [vmem:[#allocation2 + $0x6e] sm:$0x3f]
  %v387 = vld [vmem:[#allocation2 + $0x7e] sm:$0xff]
  %v388 = vld [vmem:[#allocation2 + $0x86] sm:$0x3f]
  %v389 = vld [vmem:[#allocation2 + $0x96] sm:$0xff]
  %v390 = vld [vmem:[#allocation2 + $0x9e] sm:$0x3f]
  %v391 = vld [vmem:[#allocation2 + $0xae] sm:$0xff]
  %v392 = vld [vmem:[#allocation2 + $0xb6] sm:$0x3f]
  %v393 = vld [vmem:[#allocation2 + $0xc6] sm:$0xff]
  %v394 = vld [vmem:[#allocation2 + $0xce] sm:$0x3f]
  %v395 = vld [vmem:[#allocation2 + $0xde] sm:$0xff]
  %v396 = vld [vmem:[#allocation2 + $0xe6] sm:$0x3f]
  %v397 = vld [vmem:[#allocation2 + $0xf6] sm:$0xff]
  %v398 = vld [vmem:[#allocation2 + $0xfe] sm:$0x3f]
  %v399 = vld [vmem:[#allocation2 + $0x10e] sm:$0xff]
  %v400 = vld [vmem:[#allocation2 + $0x116] sm:$0x3f]
  %v401 = vld [vmem:[#allocation2 + $0x126] sm:$0xff]
  %v402 = vld [vmem:[#allocation2 + $0x12e] sm:$0x3f]
  %v403 = vld [vmem:[#allocation2 + $0x13e] sm:$0xff]
  %v404 = vld [vmem:[#allocation2 + $0x146] sm:$0x3f]
  %v405 = vld [vmem:[#allocation2 + $0x156] sm:$0xff]
  %v406 = vld [vmem:[#allocation2 + $0x15e] sm:$0x3f]
  %v407 = vld [vmem:[#allocation2 + $0x16e] sm:$0xff]
  %v408 = vld [vmem:[#allocation2 + $0x176] sm:$0x3f]
  %v409 = vmax.f32 %v345, %v377
  %v410 = vmax.f32 %v346, %v378
  %v411 = vmax.f32 %v347, %v379
  %v412 = vmax.f32 %v348, %v380
  %v413 = vmax.f32 %v349, %v381
  %v414 = vmax.f32 %v350, %v382
  %v415 = vmax.f32 %v351, %v383
  %v416 = vmax.f32 %v352, %v384
  %v417 = vmax.f32 %v353, %v385
  %v418 = vmax.f32 %v354, %v386
  %v419 = vmax.f32 %v355, %v387
  %v420 = vmax.f32 %v356, %v388
  %v421 = vmax.f32 %v357, %v389
  %v422 = vmax.f32 %v358, %v390
  %v423 = vmax.f32 %v359, %v391
  %v424 = vmax.f32 %v360, %v392
  %v425 = vmax.f32 %v361, %v393
  %v426 = vmax.f32 %v362, %v394
  %v427 = vmax.f32 %v363, %v395
  %v428 = vmax.f32 %v364, %v396
  %v429 = vmax.f32 %v365, %v397
  %v430 = vmax.f32 %v366, %v398
  %v431 = vmax.f32 %v367, %v399
  %v432 = vmax.f32 %v368, %v400
  %v433 = vmax.f32 %v369, %v401
  %v434 = vmax.f32 %v370, %v402
  %v435 = vmax.f32 %v371, %v403
  %v436 = vmax.f32 %v372, %v404
  %v437 = vmax.f32 %v373, %v405
  %v438 = vmax.f32 %v374, %v406
  %v439 = vmax.f32 %v375, %v407
  %v440 = vmax.f32 %v376, %v408
  %v441 = vld [vmem:[#allocation2 + $0x8] sm:$0xff]
  %v442 = vld [vmem:[#allocation2 + $0x10] sm:$0x3f]
  %v443 = vld [vmem:[#allocation2 + $0x20] sm:$0xff]
  %v444 = vld [vmem:[#allocation2 + $0x28] sm:$0x3f]
  %v445 = vld [vmem:[#allocation2 + $0x38] sm:$0xff]
  %v446 = vld [vmem:[#allocation2 + $0x40] sm:$0x3f]
  %v447 = vld [vmem:[#allocation2 + $0x50] sm:$0xff]
  %v448 = vld [vmem:[#allocation2 + $0x58] sm:$0x3f]
  %v449 = vld [vmem:[#allocation2 + $0x68] sm:$0xff]
  %v450 = vld [vmem:[#allocation2 + $0x70] sm:$0x3f]
  %v451 = vld [vmem:[#allocation2 + $0x80] sm:$0xff]
  %v452 = vld [vmem:[#allocation2 + $0x88] sm:$0x3f]
  %v453 = vld [vmem:[#allocation2 + $0x98] sm:$0xff]
  %v454 = vld [vmem:[#allocation2 + $0xa0] sm:$0x3f]
  %v455 = vld [vmem:[#allocation2 + $0xb0] sm:$0xff]
  %v456 = vld [vmem:[#allocation2 + $0xb8] sm:$0x3f]
  %v457 = vld [vmem:[#allocation2 + $0xc8] sm:$0xff]
  %v458 = vld [vmem:[#allocation2 + $0xd0] sm:$0x3f]
  %v459 = vld [vmem:[#allocation2 + $0xe0] sm:$0xff]
  %v460 = vld [vmem:[#allocation2 + $0xe8] sm:$0x3f]
  %v461 = vld [vmem:[#allocation2 + $0xf8] sm:$0xff]
  %v462 = vld [vmem:[#allocation2 + $0x100] sm:$0x3f]
  %v463 = vld [vmem:[#allocation2 + $0x110] sm:$0xff]
  %v464 = vld [vmem:[#allocation2 + $0x118] sm:$0x3f]
  %v465 = vld [vmem:[#allocation2 + $0x128] sm:$0xff]
  %v466 = vld [vmem:[#allocation2 + $0x130] sm:$0x3f]
  %v467 = vld [vmem:[#allocation2 + $0x140] sm:$0xff]
  %v468 = vld [vmem:[#allocation2 + $0x148] sm:$0x3f]
  %v469 = vld [vmem:[#allocation2 + $0x158] sm:$0xff]
  %v470 = vld [vmem:[#allocation2 + $0x160] sm:$0x3f]
  %v471 = vld [vmem:[#allocation2 + $0x170] sm:$0xff]
  %v472 = vld [vmem:[#allocation2 + $0x178] sm:$0x3f]
  %v473 = vmax.f32 %v409, %v441
  %v474 = vmax.f32 %v410, %v442
  %v475 = vmax.f32 %v411, %v443
  %v476 = vmax.f32 %v412, %v444
  %v477 = vmax.f32 %v413, %v445
  %v478 = vmax.f32 %v414, %v446
  %v479 = vmax.f32 %v415, %v447
  %v480 = vmax.f32 %v416, %v448
  %v481 = vmax.f32 %v417, %v449
  %v482 = vmax.f32 %v418, %v450
  %v483 = vmax.f32 %v419, %v451
  %v484 = vmax.f32 %v420, %v452
  %v485 = vmax.f32 %v421, %v453
  %v486 = vmax.f32 %v422, %v454
  %v487 = vmax.f32 %v423, %v455
  %v488 = vmax.f32 %v424, %v456
  %v489 = vmax.f32 %v425, %v457
  %v490 = vmax.f32 %v426, %v458
  %v491 = vmax.f32 %v427, %v459
  %v492 = vmax.f32 %v428, %v460
  %v493 = vmax.f32 %v429, %v461
  %v494 = vmax.f32 %v430, %v462
  %v495 = vmax.f32 %v431, %v463
  %v496 = vmax.f32 %v432, %v464
  %v497 = vmax.f32 %v433, %v465
  %v498 = vmax.f32 %v434, %v466
  %v499 = vmax.f32 %v435, %v467
  %v500 = vmax.f32 %v436, %v468
  %v501 = vmax.f32 %v437, %v469
  %v502 = vmax.f32 %v438, %v470
  %v503 = vmax.f32 %v439, %v471
  %v504 = vmax.f32 %v440, %v472
  %v505 = vld [vmem:[#allocation2 + $0x9] sm:$0xff]
  %v506 = vld [vmem:[#allocation2 + $0x11] sm:$0x3f]
  %v507 = vld [vmem:[#allocation2 + $0x21] sm:$0xff]
  %v508 = vld [vmem:[#allocation2 + $0x29] sm:$0x3f]
  %v509 = vld [vmem:[#allocation2 + $0x39] sm:$0xff]
  %v510 = vld [vmem:[#allocation2 + $0x41] sm:$0x3f]
  %v511 = vld [vmem:[#allocation2 + $0x51] sm:$0xff]
  %v512 = vld [vmem:[#allocation2 + $0x59] sm:$0x3f]
  %v513 = vld [vmem:[#allocation2 + $0x69] sm:$0xff]
  %v514 = vld [vmem:[#allocation2 + $0x71] sm:$0x3f]
  %v515 = vld [vmem:[#allocation2 + $0x81] sm:$0xff]
  %v516 = vld [vmem:[#allocation2 + $0x89] sm:$0x3f]
  %v517 = vld [vmem:[#allocation2 + $0x99] sm:$0xff]
  %v518 = vld [vmem:[#allocation2 + $0xa1] sm:$0x3f]
  %v519 = vld [vmem:[#allocation2 + $0xb1] sm:$0xff]
  %v520 = vld [vmem:[#allocation2 + $0xb9] sm:$0x3f]
  %v521 = vld [vmem:[#allocation2 + $0xc9] sm:$0xff]
  %v522 = vld [vmem:[#allocation2 + $0xd1] sm:$0x3f]
  %v523 = vld [vmem:[#allocation2 + $0xe1] sm:$0xff]
  %v524 = vld [vmem:[#allocation2 + $0xe9] sm:$0x3f]
  %v525 = vld [vmem:[#allocation2 + $0xf9] sm:$0xff]
  %v526 = vld [vmem:[#allocation2 + $0x101] sm:$0x3f]
  %v527 = vld [vmem:[#allocation2 + $0x111] sm:$0xff]
  %v528 = vld [vmem:[#allocation2 + $0x119] sm:$0x3f]
  %v529 = vld [vmem:[#allocation2 + $0x129] sm:$0xff]
  %v530 = vld [vmem:[#allocation2 + $0x131] sm:$0x3f]
  %v531 = vld [vmem:[#allocation2 + $0x141] sm:$0xff]
  %v532 = vld [vmem:[#allocation2 + $0x149] sm:$0x3f]
  %v533 = vld [vmem:[#allocation2 + $0x159] sm:$0xff]
  %v534 = vld [vmem:[#allocation2 + $0x161] sm:$0x3f]
  %v535 = vld [vmem:[#allocation2 + $0x171] sm:$0xff]
  %v536 = vld [vmem:[#allocation2 + $0x179] sm:$0x3f]
  %v537 = vmax.f32 %v473, %v505
  %v538 = vmax.f32 %v474, %v506
  %v539 = vmax.f32 %v475, %v507
  %v540 = vmax.f32 %v476, %v508
  %v541 = vmax.f32 %v477, %v509
  %v542 = vmax.f32 %v478, %v510
  %v543 = vmax.f32 %v479, %v511
  %v544 = vmax.f32 %v480, %v512
  %v545 = vmax.f32 %v481, %v513
  %v546 = vmax.f32 %v482, %v514
  %v547 = vmax.f32 %v483, %v515
  %v548 = vmax.f32 %v484, %v516
  %v549 = vmax.f32 %v485, %v517
  %v550 = vmax.f32 %v486, %v518
  %v551 = vmax.f32 %v487, %v519
  %v552 = vmax.f32 %v488, %v520
  %v553 = vmax.f32 %v489, %v521
  %v554 = vmax.f32 %v490, %v522
  %v555 = vmax.f32 %v491, %v523
  %v556 = vmax.f32 %v492, %v524
  %v557 = vmax.f32 %v493, %v525
  %v558 = vmax.f32 %v494, %v526
  %v559 = vmax.f32 %v495, %v527
  %v560 = vmax.f32 %v496, %v528
  %v561 = vmax.f32 %v497, %v529
  %v562 = vmax.f32 %v498, %v530
  %v563 = vmax.f32 %v499, %v531
  %v564 = vmax.f32 %v500, %v532
  %v565 = vmax.f32 %v501, %v533
  %v566 = vmax.f32 %v502, %v534
  %v567 = vmax.f32 %v503, %v535
  %v568 = vmax.f32 %v504, %v536
  %v569 = vld [vmem:[#allocation2 + $0xa] sm:$0xff]
  %v570 = vld [vmem:[#allocation2 + $0x12] sm:$0x3f]
  %v571 = vld [vmem:[#allocation2 + $0x22] sm:$0xff]
  %v572 = vld [vmem:[#allocation2 + $0x2a] sm:$0x3f]
  %v573 = vld [vmem:[#allocation2 + $0x3a] sm:$0xff]
  %v574 = vld [vmem:[#allocation2 + $0x42] sm:$0x3f]
  %v575 = vld [vmem:[#allocation2 + $0x52] sm:$0xff]
  %v576 = vld [vmem:[#allocation2 + $0x5a] sm:$0x3f]
  %v577 = vld [vmem:[#allocation2 + $0x6a] sm:$0xff]
  %v578 = vld [vmem:[#allocation2 + $0x72] sm:$0x3f]
  %v579 = vld [vmem:[#allocation2 + $0x82] sm:$0xff]
  %v580 = vld [vmem:[#allocation2 + $0x8a] sm:$0x3f]
  %v581 = vld [vmem:[#allocation2 + $0x9a] sm:$0xff]
  %v582 = vld [vmem:[#allocation2 + $0xa2] sm:$0x3f]
  %v583 = vld [vmem:[#allocation2 + $0xb2] sm:$0xff]
  %v584 = vld [vmem:[#allocation2 + $0xba] sm:$0x3f]
  %v585 = vld [vmem:[#allocation2 + $0xca] sm:$0xff]
  %v586 = vld [vmem:[#allocation2 + $0xd2] sm:$0x3f]
  %v587 = vld [vmem:[#allocation2 + $0xe2] sm:$0xff]
  %v588 = vld [vmem:[#allocation2 + $0xea] sm:$0x3f]
  %v589 = vld [vmem:[#allocation2 + $0xfa] sm:$0xff]
  %v590 = vld [vmem:[#allocation2 + $0x102] sm:$0x3f]
  %v591 = vld [vmem:[#allocation2 + $0x112] sm:$0xff]
  %v592 = vld [vmem:[#allocation2 + $0x11a] sm:$0x3f]
  %v593 = vld [vmem:[#allocation2 + $0x12a] sm:$0xff]
  %v594 = vld [vmem:[#allocation2 + $0x132] sm:$0x3f]
  %v595 = vld [vmem:[#allocation2 + $0x142] sm:$0xff]
  %v596 = vld [vmem:[#allocation2 + $0x14a] sm:$0x3f]
  %v597 = vld [vmem:[#allocation2 + $0x15a] sm:$0xff]
  %v598 = vld [vmem:[#allocation2 + $0x162] sm:$0x3f]
  %v599 = vld [vmem:[#allocation2 + $0x172] sm:$0xff]
  %v600 = vld [vmem:[#allocation2 + $0x17a] sm:$0x3f]
  %v601 = vmax.f32 %v537, %v569
  %v602 = vmax.f32 %v538, %v570
  %v603 = vmax.f32 %v539, %v571
  %v604 = vmax.f32 %v540, %v572
  %v605 = vmax.f32 %v541, %v573
  %v606 = vmax.f32 %v542, %v574
  %v607 = vmax.f32 %v543, %v575
  %v608 = vmax.f32 %v544, %v576
  %v609 = vmax.f32 %v545, %v577
  %v610 = vmax.f32 %v546, %v578
  %v611 = vmax.f32 %v547, %v579
  %v612 = vmax.f32 %v548, %v580
  %v613 = vmax.f32 %v549, %v581
  %v614 = vmax.f32 %v550, %v582
  %v615 = vmax.f32 %v551, %v583
  %v616 = vmax.f32 %v552, %v584
  %v617 = vmax.f32 %v553, %v585
  %v618 = vmax.f32 %v554, %v586
  %v619 = vmax.f32 %v555, %v587
  %v620 = vmax.f32 %v556, %v588
  %v621 = vmax.f32 %v557, %v589
  %v622 = vmax.f32 %v558, %v590
  %v623 = vmax.f32 %v559, %v591
  %v624 = vmax.f32 %v560, %v592
  %v625 = vmax.f32 %v561, %v593
  %v626 = vmax.f32 %v562, %v594
  %v627 = vmax.f32 %v563, %v595
  %v628 = vmax.f32 %v564, %v596
  %v629 = vmax.f32 %v565, %v597
  %v630 = vmax.f32 %v566, %v598
  %v631 = vmax.f32 %v567, %v599
  %v632 = vmax.f32 %v568, %v600
  %633 = vst.msk [vmem:[#allocation3 + $0x1] sm:$0xff] %vm40, %v601
  %vm634 = vcmask 62464
  %635 = vst.msk [vmem:[#allocation3 + $0x9] sm:$0x3f] %vm634, %v602
  %636 = vst.msk [vmem:[#allocation3 + $0x11] sm:$0xff] %vm40, %v603
  %637 = vst.msk [vmem:[#allocation3 + $0x19] sm:$0x3f] %vm634, %v604
  %638 = vst.msk [vmem:[#allocation3 + $0x21] sm:$0xff] %vm40, %v605
  %639 = vst.msk [vmem:[#allocation3 + $0x29] sm:$0x3f] %vm634, %v606
  %640 = vst.msk [vmem:[#allocation3 + $0x31] sm:$0xff] %vm40, %v607
  %641 = vst.msk [vmem:[#allocation3 + $0x39] sm:$0x3f] %vm634, %v608
  %642 = vst.msk [vmem:[#allocation3 + $0x41] sm:$0xff] %vm40, %v609
  %643 = vst.msk [vmem:[#allocation3 + $0x49] sm:$0x3f] %vm634, %v610
  %644 = vst.msk [vmem:[#allocation3 + $0x51] sm:$0xff] %vm40, %v611
  %645 = vst.msk [vmem:[#allocation3 + $0x59] sm:$0x3f] %vm634, %v612
  %646 = vst.msk [vmem:[#allocation3 + $0x61] sm:$0xff] %vm40, %v613
  %647 = vst.msk [vmem:[#allocation3 + $0x69] sm:$0x3f] %vm634, %v614
  %648 = vst.msk [vmem:[#allocation3 + $0x71] sm:$0xff] %vm40, %v615
  %649 = vst.msk [vmem:[#allocation3 + $0x79] sm:$0x3f] %vm634, %v616
  %650 = vst.msk [vmem:[#allocation3 + $0x81] sm:$0xff] %vm40, %v617
  %651 = vst.msk [vmem:[#allocation3 + $0x89] sm:$0x3f] %vm634, %v618
  %652 = vst.msk [vmem:[#allocation3 + $0x91] sm:$0xff] %vm40, %v619
  %653 = vst.msk [vmem:[#allocation3 + $0x99] sm:$0x3f] %vm634, %v620
  %654 = vst.msk [vmem:[#allocation3 + $0xa1] sm:$0xff] %vm40, %v621
  %655 = vst.msk [vmem:[#allocation3 + $0xa9] sm:$0x3f] %vm634, %v622
  %656 = vst.msk [vmem:[#allocation3 + $0xb1] sm:$0xff] %vm40, %v623
  %657 = vst.msk [vmem:[#allocation3 + $0xb9] sm:$0x3f] %vm634, %v624
  %658 = vst.msk [vmem:[#allocation3 + $0xc1] sm:$0xff] %vm40, %v625
  %659 = vst.msk [vmem:[#allocation3 + $0xc9] sm:$0x3f] %vm634, %v626
  %660 = vst.msk [vmem:[#allocation3 + $0xd1] sm:$0xff] %vm40, %v627
  %661 = vst.msk [vmem:[#allocation3 + $0xd9] sm:$0x3f] %vm634, %v628
  %662 = vst.msk [vmem:[#allocation3 + $0xe1] sm:$0xff] %vm40, %v629
  %663 = vst.msk [vmem:[#allocation3 + $0xe9] sm:$0x3f] %vm634, %v630
  %664 = vst.msk [vmem:[#allocation3 + $0xf1] sm:$0xff] %vm40, %v631
  %665 = vst.msk [vmem:[#allocation3 + $0xf9] sm:$0x3f] %vm634, %v632
  %v666 = vld [vmem:[#allocation2] sm:$0x1]
  %v667 = vld [vmem:[#allocation2 + $0x18] sm:$0x1]
  %v668 = vld [vmem:[#allocation2 + $0x30] sm:$0x1]
  %v669 = vld [vmem:[#allocation2 + $0x48] sm:$0x1]
  %v670 = vld [vmem:[#allocation2 + $0x60] sm:$0x1]
  %v671 = vld [vmem:[#allocation2 + $0x78] sm:$0x1]
  %v672 = vld [vmem:[#allocation2 + $0x90] sm:$0x1]
  %v673 = vld [vmem:[#allocation2 + $0xa8] sm:$0x1]
  %v674 = vld [vmem:[#allocation2 + $0xc0] sm:$0x1]
  %v675 = vld [vmem:[#allocation2 + $0xd8] sm:$0x1]
  %v676 = vld [vmem:[#allocation2 + $0xf0] sm:$0x1]
  %v677 = vld [vmem:[#allocation2 + $0x108] sm:$0x1]
  %v678 = vld [vmem:[#allocation2 + $0x120] sm:$0x1]
  %v679 = vld [vmem:[#allocation2 + $0x138] sm:$0x1]
  %v680 = vld [vmem:[#allocation2 + $0x150] sm:$0x1]
  %v681 = vld [vmem:[#allocation2 + $0x168] sm:$0x1]
  %v682 = vld [vmem:[#allocation2 + $0x1] sm:$0x1]
  %v683 = vld [vmem:[#allocation2 + $0x19] sm:$0x1]
  %v684 = vld [vmem:[#allocation2 + $0x31] sm:$0x1]
  %v685 = vld [vmem:[#allocation2 + $0x49] sm:$0x1]
  %v686 = vld [vmem:[#allocation2 + $0x61] sm:$0x1]
  %v687 = vld [vmem:[#allocation2 + $0x79] sm:$0x1]
  %v688 = vld [vmem:[#allocation2 + $0x91] sm:$0x1]
  %v689 = vld [vmem:[#allocation2 + $0xa9] sm:$0x1]
  %v690 = vld [vmem:[#allocation2 + $0xc1] sm:$0x1]
  %v691 = vld [vmem:[#allocation2 + $0xd9] sm:$0x1]
  %v692 = vld [vmem:[#allocation2 + $0xf1] sm:$0x1]
  %v693 = vld [vmem:[#allocation2 + $0x109] sm:$0x1]
  %v694 = vld [vmem:[#allocation2 + $0x121] sm:$0x1]
  %v695 = vld [vmem:[#allocation2 + $0x139] sm:$0x1]
  %v696 = vld [vmem:[#allocation2 + $0x151] sm:$0x1]
  %v697 = vld [vmem:[#allocation2 + $0x169] sm:$0x1]
  %v698 = vmax.f32 %v666, %v682
  %v699 = vmax.f32 %v667, %v683
  %v700 = vmax.f32 %v668, %v684
  %v701 = vmax.f32 %v669, %v685
  %v702 = vmax.f32 %v670, %v686
  %v703 = vmax.f32 %v671, %v687
  %v704 = vmax.f32 %v672, %v688
  %v705 = vmax.f32 %v673, %v689
  %v706 = vmax.f32 %v674, %v690
  %v707 = vmax.f32 %v675, %v691
  %v708 = vmax.f32 %v676, %v692
  %v709 = vmax.f32 %v677, %v693
  %v710 = vmax.f32 %v678, %v694
  %v711 = vmax.f32 %v679, %v695
  %v712 = vmax.f32 %v680, %v696
  %v713 = vmax.f32 %v681, %v697
  %v714 = vld [vmem:[#allocation2 + $0x4] sm:$0x1]
  %v715 = vld [vmem:[#allocation2 + $0x1c] sm:$0x1]
  %v716 = vld [vmem:[#allocation2 + $0x34] sm:$0x1]
  %v717 = vld [vmem:[#allocation2 + $0x4c] sm:$0x1]
  %v718 = vld [vmem:[#allocation2 + $0x64] sm:$0x1]
  %v719 = vld [vmem:[#allocation2 + $0x7c] sm:$0x1]
  %v720 = vld [vmem:[#allocation2 + $0x94] sm:$0x1]
  %v721 = vld [vmem:[#allocation2 + $0xac] sm:$0x1]
  %v722 = vld [vmem:[#allocation2 + $0xc4] sm:$0x1]
  %v723 = vld [vmem:[#allocation2 + $0xdc] sm:$0x1]
  %v724 = vld [vmem:[#allocation2 + $0xf4] sm:$0x1]
  %v725 = vld [vmem:[#allocation2 + $0x10c] sm:$0x1]
  %v726 = vld [vmem:[#allocation2 + $0x124] sm:$0x1]
  %v727 = vld [vmem:[#allocation2 + $0x13c] sm:$0x1]
  %v728 = vld [vmem:[#allocation2 + $0x154] sm:$0x1]
  %v729 = vld [vmem:[#allocation2 + $0x16c] sm:$0x1]
  %v730 = vmax.f32 %v698, %v714
  %v731 = vmax.f32 %v699, %v715
  %v732 = vmax.f32 %v700, %v716
  %v733 = vmax.f32 %v701, %v717
  %v734 = vmax.f32 %v702, %v718
  %v735 = vmax.f32 %v703, %v719
  %v736 = vmax.f32 %v704, %v720
  %v737 = vmax.f32 %v705, %v721
  %v738 = vmax.f32 %v706, %v722
  %v739 = vmax.f32 %v707, %v723
  %v740 = vmax.f32 %v708, %v724
  %v741 = vmax.f32 %v709, %v725
  %v742 = vmax.f32 %v710, %v726
  %v743 = vmax.f32 %v711, %v727
  %v744 = vmax.f32 %v712, %v728
  %v745 = vmax.f32 %v713, %v729
  %v746 = vld [vmem:[#allocation2 + $0x5] sm:$0x1]
  %v747 = vld [vmem:[#allocation2 + $0x1d] sm:$0x1]
  %v748 = vld [vmem:[#allocation2 + $0x35] sm:$0x1]
  %v749 = vld [vmem:[#allocation2 + $0x4d] sm:$0x1]
  %v750 = vld [vmem:[#allocation2 + $0x65] sm:$0x1]
  %v751 = vld [vmem:[#allocation2 + $0x7d] sm:$0x1]
  %v752 = vld [vmem:[#allocation2 + $0x95] sm:$0x1]
  %v753 = vld [vmem:[#allocation2 + $0xad] sm:$0x1]
  %v754 = vld [vmem:[#allocation2 + $0xc5] sm:$0x1]
  %v755 = vld [vmem:[#allocation2 + $0xdd] sm:$0x1]
  %v756 = vld [vmem:[#allocation2 + $0xf5] sm:$0x1]
  %v757 = vld [vmem:[#allocation2 + $0x10d] sm:$0x1]
  %v758 = vld [vmem:[#allocation2 + $0x125] sm:$0x1]
  %v759 = vld [vmem:[#allocation2 + $0x13d] sm:$0x1]
  %v760 = vld [vmem:[#allocation2 + $0x155] sm:$0x1]
  %v761 = vld [vmem:[#allocation2 + $0x16d] sm:$0x1]
  %v762 = vmax.f32 %v730, %v746
  %v763 = vmax.f32 %v731, %v747
  %v764 = vmax.f32 %v732, %v748
  %v765 = vmax.f32 %v733, %v749
  %v766 = vmax.f32 %v734, %v750
  %v767 = vmax.f32 %v735, %v751
  %v768 = vmax.f32 %v736, %v752
  %v769 = vmax.f32 %v737, %v753
  %v770 = vmax.f32 %v738, %v754
  %v771 = vmax.f32 %v739, %v755
  %v772 = vmax.f32 %v740, %v756
  %v773 = vmax.f32 %v741, %v757
  %v774 = vmax.f32 %v742, %v758
  %v775 = vmax.f32 %v743, %v759
  %v776 = vmax.f32 %v744, %v760
  %v777 = vmax.f32 %v745, %v761
  %v778 = vld [vmem:[#allocation2 + $0x8] sm:$0x1]
  %v779 = vld [vmem:[#allocation2 + $0x20] sm:$0x1]
  %v780 = vld [vmem:[#allocation2 + $0x38] sm:$0x1]
  %v781 = vld [vmem:[#allocation2 + $0x50] sm:$0x1]
  %v782 = vld [vmem:[#allocation2 + $0x68] sm:$0x1]
  %v783 = vld [vmem:[#allocation2 + $0x80] sm:$0x1]
  %v784 = vld [vmem:[#allocation2 + $0x98] sm:$0x1]
  %v785 = vld [vmem:[#allocation2 + $0xb0] sm:$0x1]
  %v786 = vld [vmem:[#allocation2 + $0xc8] sm:$0x1]
  %v787 = vld [vmem:[#allocation2 + $0xe0] sm:$0x1]
  %v788 = vld [vmem:[#allocation2 + $0xf8] sm:$0x1]
  %v789 = vld [vmem:[#allocation2 + $0x110] sm:$0x1]
  %v790 = vld [vmem:[#allocation2 + $0x128] sm:$0x1]
  %v791 = vld [vmem:[#allocation2 + $0x140] sm:$0x1]
  %v792 = vld [vmem:[#allocation2 + $0x158] sm:$0x1]
  %v793 = vld [vmem:[#allocation2 + $0x170] sm:$0x1]
  %v794 = vmax.f32 %v762, %v778
  %v795 = vmax.f32 %v763, %v779
  %v796 = vmax.f32 %v764, %v780
  %v797 = vmax.f32 %v765, %v781
  %v798 = vmax.f32 %v766, %v782
  %v799 = vmax.f32 %v767, %v783
  %v800 = vmax.f32 %v768, %v784
  %v801 = vmax.f32 %v769, %v785
  %v802 = vmax.f32 %v770, %v786
  %v803 = vmax.f32 %v771, %v787
  %v804 = vmax.f32 %v772, %v788
  %v805 = vmax.f32 %v773, %v789
  %v806 = vmax.f32 %v774, %v790
  %v807 = vmax.f32 %v775, %v791
  %v808 = vmax.f32 %v776, %v792
  %v809 = vmax.f32 %v777, %v793
  %v810 = vld [vmem:[#allocation2 + $0x9] sm:$0x1]
  %v811 = vld [vmem:[#allocation2 + $0x21] sm:$0x1]
  %v812 = vld [vmem:[#allocation2 + $0x39] sm:$0x1]
  %v813 = vld [vmem:[#allocation2 + $0x51] sm:$0x1]
  %v814 = vld [vmem:[#allocation2 + $0x69] sm:$0x1]
  %v815 = vld [vmem:[#allocation2 + $0x81] sm:$0x1]
  %v816 = vld [vmem:[#allocation2 + $0x99] sm:$0x1]
  %v817 = vld [vmem:[#allocation2 + $0xb1] sm:$0x1]
  %v818 = vld [vmem:[#allocation2 + $0xc9] sm:$0x1]
  %v819 = vld [vmem:[#allocation2 + $0xe1] sm:$0x1]
  %v820 = vld [vmem:[#allocation2 + $0xf9] sm:$0x1]
  %v821 = vld [vmem:[#allocation2 + $0x111] sm:$0x1]
  %v822 = vld [vmem:[#allocation2 + $0x129] sm:$0x1]
  %v823 = vld [vmem:[#allocation2 + $0x141] sm:$0x1]
  %v824 = vld [vmem:[#allocation2 + $0x159] sm:$0x1]
  %v825 = vld [vmem:[#allocation2 + $0x171] sm:$0x1]
  %v826 = vmax.f32 %v794, %v810
  %v827 = vmax.f32 %v795, %v811
  %v828 = vmax.f32 %v796, %v812
  %v829 = vmax.f32 %v797, %v813
  %v830 = vmax.f32 %v798, %v814
  %v831 = vmax.f32 %v799, %v815
  %v832 = vmax.f32 %v800, %v816
  %v833 = vmax.f32 %v801, %v817
  %v834 = vmax.f32 %v802, %v818
  %v835 = vmax.f32 %v803, %v819
  %v836 = vmax.f32 %v804, %v820
  %v837 = vmax.f32 %v805, %v821
  %v838 = vmax.f32 %v806, %v822
  %v839 = vmax.f32 %v807, %v823
  %v840 = vmax.f32 %v808, %v824
  %v841 = vmax.f32 %v809, %v825
  %vm842 = vcmask 57344
  %843 = vst.msk [vmem:[#allocation3] sm:$0x1] %vm842, %v826
  %844 = vst.msk [vmem:[#allocation3 + $0x10] sm:$0x1] %vm842, %v827
  %845 = vst.msk [vmem:[#allocation3 + $0x20] sm:$0x1] %vm842, %v828
  %846 = vst.msk [vmem:[#allocation3 + $0x30] sm:$0x1] %vm842, %v829
  %847 = vst.msk [vmem:[#allocation3 + $0x40] sm:$0x1] %vm842, %v830
  %848 = vst.msk [vmem:[#allocation3 + $0x50] sm:$0x1] %vm842, %v831
  %849 = vst.msk [vmem:[#allocation3 + $0x60] sm:$0x1] %vm842, %v832
  %850 = vst.msk [vmem:[#allocation3 + $0x70] sm:$0x1] %vm842, %v833
  %851 = vst.msk [vmem:[#allocation3 + $0x80] sm:$0x1] %vm842, %v834
  %852 = vst.msk [vmem:[#allocation3 + $0x90] sm:$0x1] %vm842, %v835
  %853 = vst.msk [vmem:[#allocation3 + $0xa0] sm:$0x1] %vm842, %v836
  %854 = vst.msk [vmem:[#allocation3 + $0xb0] sm:$0x1] %vm842, %v837
  %855 = vst.msk [vmem:[#allocation3 + $0xc0] sm:$0x1] %vm842, %v838
  %856 = vst.msk [vmem:[#allocation3 + $0xd0] sm:$0x1] %vm842, %v839
  %857 = vst.msk [vmem:[#allocation3 + $0xe0] sm:$0x1] %vm842, %v840
  %858 = vst.msk [vmem:[#allocation3 + $0xf0] sm:$0x1] %vm842, %v841
  %v859 = vld [vmem:[#allocation2 + $0xe] sm:$0x1]
  %v860 = vld [vmem:[#allocation2 + $0x26] sm:$0x1]
  %v861 = vld [vmem:[#allocation2 + $0x3e] sm:$0x1]
  %v862 = vld [vmem:[#allocation2 + $0x56] sm:$0x1]
  %v863 = vld [vmem:[#allocation2 + $0x6e] sm:$0x1]
  %v864 = vld [vmem:[#allocation2 + $0x86] sm:$0x1]
  %v865 = vld [vmem:[#allocation2 + $0x9e] sm:$0x1]
  %v866 = vld [vmem:[#allocation2 + $0xb6] sm:$0x1]
  %v867 = vld [vmem:[#allocation2 + $0xce] sm:$0x1]
  %v868 = vld [vmem:[#allocation2 + $0xe6] sm:$0x1]
  %v869 = vld [vmem:[#allocation2 + $0xfe] sm:$0x1]
  %v870 = vld [vmem:[#allocation2 + $0x116] sm:$0x1]
  %v871 = vld [vmem:[#allocation2 + $0x12e] sm:$0x1]
  %v872 = vld [vmem:[#allocation2 + $0x146] sm:$0x1]
  %v873 = vld [vmem:[#allocation2 + $0x15e] sm:$0x1]
  %v874 = vld [vmem:[#allocation2 + $0x176] sm:$0x1]
  %v875 = vld [vmem:[#allocation2 + $0xf] sm:$0x1]
  %v876 = vld [vmem:[#allocation2 + $0x27] sm:$0x1]
  %v877 = vld [vmem:[#allocation2 + $0x3f] sm:$0x1]
  %v878 = vld [vmem:[#allocation2 + $0x57] sm:$0x1]
  %v879 = vld [vmem:[#allocation2 + $0x6f] sm:$0x1]
  %v880 = vld [vmem:[#allocation2 + $0x87] sm:$0x1]
  %v881 = vld [vmem:[#allocation2 + $0x9f] sm:$0x1]
  %v882 = vld [vmem:[#allocation2 + $0xb7] sm:$0x1]
  %v883 = vld [vmem:[#allocation2 + $0xcf] sm:$0x1]
  %v884 = vld [vmem:[#allocation2 + $0xe7] sm:$0x1]
  %v885 = vld [vmem:[#allocation2 + $0xff] sm:$0x1]
  %v886 = vld [vmem:[#allocation2 + $0x117] sm:$0x1]
  %v887 = vld [vmem:[#allocation2 + $0x12f] sm:$0x1]
  %v888 = vld [vmem:[#allocation2 + $0x147] sm:$0x1]
  %v889 = vld [vmem:[#allocation2 + $0x15f] sm:$0x1]
  %v890 = vld [vmem:[#allocation2 + $0x177] sm:$0x1]
  %v891 = vmax.f32 %v859, %v875
  %v892 = vmax.f32 %v860, %v876
  %v893 = vmax.f32 %v861, %v877
  %v894 = vmax.f32 %v862, %v878
  %v895 = vmax.f32 %v863, %v879
  %v896 = vmax.f32 %v864, %v880
  %v897 = vmax.f32 %v865, %v881
  %v898 = vmax.f32 %v866, %v882
  %v899 = vmax.f32 %v867, %v883
  %v900 = vmax.f32 %v868, %v884
  %v901 = vmax.f32 %v869, %v885
  %v902 = vmax.f32 %v870, %v886
  %v903 = vmax.f32 %v871, %v887
  %v904 = vmax.f32 %v872, %v888
  %v905 = vmax.f32 %v873, %v889
  %v906 = vmax.f32 %v874, %v890
  %v907 = vld [vmem:[#allocation2 + $0x12] sm:$0x1]
  %v908 = vld [vmem:[#allocation2 + $0x2a] sm:$0x1]
  %v909 = vld [vmem:[#allocation2 + $0x42] sm:$0x1]
  %v910 = vld [vmem:[#allocation2 + $0x5a] sm:$0x1]
  %v911 = vld [vmem:[#allocation2 + $0x72] sm:$0x1]
  %v912 = vld [vmem:[#allocation2 + $0x8a] sm:$0x1]
  %v913 = vld [vmem:[#allocation2 + $0xa2] sm:$0x1]
  %v914 = vld [vmem:[#allocation2 + $0xba] sm:$0x1]
  %v915 = vld [vmem:[#allocation2 + $0xd2] sm:$0x1]
  %v916 = vld [vmem:[#allocation2 + $0xea] sm:$0x1]
  %v917 = vld [vmem:[#allocation2 + $0x102] sm:$0x1]
  %v918 = vld [vmem:[#allocation2 + $0x11a] sm:$0x1]
  %v919 = vld [vmem:[#allocation2 + $0x132] sm:$0x1]
  %v920 = vld [vmem:[#allocation2 + $0x14a] sm:$0x1]
  %v921 = vld [vmem:[#allocation2 + $0x162] sm:$0x1]
  %v922 = vld [vmem:[#allocation2 + $0x17a] sm:$0x1]
  %v923 = vmax.f32 %v891, %v907
  %v924 = vmax.f32 %v892, %v908
  %v925 = vmax.f32 %v893, %v909
  %v926 = vmax.f32 %v894, %v910
  %v927 = vmax.f32 %v895, %v911
  %v928 = vmax.f32 %v896, %v912
  %v929 = vmax.f32 %v897, %v913
  %v930 = vmax.f32 %v898, %v914
  %v931 = vmax.f32 %v899, %v915
  %v932 = vmax.f32 %v900, %v916
  %v933 = vmax.f32 %v901, %v917
  %v934 = vmax.f32 %v902, %v918
  %v935 = vmax.f32 %v903, %v919
  %v936 = vmax.f32 %v904, %v920
  %v937 = vmax.f32 %v905, %v921
  %v938 = vmax.f32 %v906, %v922
  %v939 = vld [vmem:[#allocation2 + $0x13] sm:$0x1]
  %v940 = vld [vmem:[#allocation2 + $0x2b] sm:$0x1]
  %v941 = vld [vmem:[#allocation2 + $0x43] sm:$0x1]
  %v942 = vld [vmem:[#allocation2 + $0x5b] sm:$0x1]
  %v943 = vld [vmem:[#allocation2 + $0x73] sm:$0x1]
  %v944 = vld [vmem:[#allocation2 + $0x8b] sm:$0x1]
  %v945 = vld [vmem:[#allocation2 + $0xa3] sm:$0x1]
  %v946 = vld [vmem:[#allocation2 + $0xbb] sm:$0x1]
  %v947 = vld [vmem:[#allocation2 + $0xd3] sm:$0x1]
  %v948 = vld [vmem:[#allocation2 + $0xeb] sm:$0x1]
  %v949 = vld [vmem:[#allocation2 + $0x103] sm:$0x1]
  %v950 = vld [vmem:[#allocation2 + $0x11b] sm:$0x1]
  %v951 = vld [vmem:[#allocation2 + $0x133] sm:$0x1]
  %v952 = vld [vmem:[#allocation2 + $0x14b] sm:$0x1]
  %v953 = vld [vmem:[#allocation2 + $0x163] sm:$0x1]
  %v954 = vld [vmem:[#allocation2 + $0x17b] sm:$0x1]
  %v955 = vmax.f32 %v923, %v939
  %v956 = vmax.f32 %v924, %v940
  %v957 = vmax.f32 %v925, %v941
  %v958 = vmax.f32 %v926, %v942
  %v959 = vmax.f32 %v927, %v943
  %v960 = vmax.f32 %v928, %v944
  %v961 = vmax.f32 %v929, %v945
  %v962 = vmax.f32 %v930, %v946
  %v963 = vmax.f32 %v931, %v947
  %v964 = vmax.f32 %v932, %v948
  %v965 = vmax.f32 %v933, %v949
  %v966 = vmax.f32 %v934, %v950
  %v967 = vmax.f32 %v935, %v951
  %v968 = vmax.f32 %v936, %v952
  %v969 = vmax.f32 %v937, %v953
  %v970 = vmax.f32 %v938, %v954
  %v971 = vld [vmem:[#allocation2 + $0x16] sm:$0x1]
  %v972 = vld [vmem:[#allocation2 + $0x2e] sm:$0x1]
  %v973 = vld [vmem:[#allocation2 + $0x46] sm:$0x1]
  %v974 = vld [vmem:[#allocation2 + $0x5e] sm:$0x1]
  %v975 = vld [vmem:[#allocation2 + $0x76] sm:$0x1]
  %v976 = vld [vmem:[#allocation2 + $0x8e] sm:$0x1]
  %v977 = vld [vmem:[#allocation2 + $0xa6] sm:$0x1]
  %v978 = vld [vmem:[#allocation2 + $0xbe] sm:$0x1]
  %v979 = vld [vmem:[#allocation2 + $0xd6] sm:$0x1]
  %v980 = vld [vmem:[#allocation2 + $0xee] sm:$0x1]
  %v981 = vld [vmem:[#allocation2 + $0x106] sm:$0x1]
  %v982 = vld [vmem:[#allocation2 + $0x11e] sm:$0x1]
  %v983 = vld [vmem:[#allocation2 + $0x136] sm:$0x1]
  %v984 = vld [vmem:[#allocation2 + $0x14e] sm:$0x1]
  %v985 = vld [vmem:[#allocation2 + $0x166] sm:$0x1]
  %v986 = vld [vmem:[#allocation2 + $0x17e] sm:$0x1]
  %v987 = vmax.f32 %v955, %v971
  %v988 = vmax.f32 %v956, %v972
  %v989 = vmax.f32 %v957, %v973
  %v990 = vmax.f32 %v958, %v974
  %v991 = vmax.f32 %v959, %v975
  %v992 = vmax.f32 %v960, %v976
  %v993 = vmax.f32 %v961, %v977
  %v994 = vmax.f32 %v962, %v978
  %v995 = vmax.f32 %v963, %v979
  %v996 = vmax.f32 %v964, %v980
  %v997 = vmax.f32 %v965, %v981
  %v998 = vmax.f32 %v966, %v982
  %v999 = vmax.f32 %v967, %v983
  %v1000 = vmax.f32 %v968, %v984
  %v1001 = vmax.f32 %v969, %v985
  %v1002 = vmax.f32 %v970, %v986
  %v1003 = vld [vmem:[#allocation2 + $0x17] sm:$0x1]
  %v1004 = vld [vmem:[#allocation2 + $0x2f] sm:$0x1]
  %v1005 = vld [vmem:[#allocation2 + $0x47] sm:$0x1]
  %v1006 = vld [vmem:[#allocation2 + $0x5f] sm:$0x1]
  %v1007 = vld [vmem:[#allocation2 + $0x77] sm:$0x1]
  %v1008 = vld [vmem:[#allocation2 + $0x8f] sm:$0x1]
  %v1009 = vld [vmem:[#allocation2 + $0xa7] sm:$0x1]
  %v1010 = vld [vmem:[#allocation2 + $0xbf] sm:$0x1]
  %v1011 = vld [vmem:[#allocation2 + $0xd7] sm:$0x1]
  %v1012 = vld [vmem:[#allocation2 + $0xef] sm:$0x1]
  %v1013 = vld [vmem:[#allocation2 + $0x107] sm:$0x1]
  %v1014 = vld [vmem:[#allocation2 + $0x11f] sm:$0x1]
  %v1015 = vld [vmem:[#allocation2 + $0x137] sm:$0x1]
  %v1016 = vld [vmem:[#allocation2 + $0x14f] sm:$0x1]
  %v1017 = vld [vmem:[#allocation2 + $0x167] sm:$0x1]
  %v1018 = vld [vmem:[#allocation2 + $0x17f] sm:$0x1]
  %v1019 = vmax.f32 %v987, %v1003
  %v1020 = vmax.f32 %v988, %v1004
  %v1021 = vmax.f32 %v989, %v1005
  %v1022 = vmax.f32 %v990, %v1006
  %v1023 = vmax.f32 %v991, %v1007
  %v1024 = vmax.f32 %v992, %v1008
  %v1025 = vmax.f32 %v993, %v1009
  %v1026 = vmax.f32 %v994, %v1010
  %v1027 = vmax.f32 %v995, %v1011
  %v1028 = vmax.f32 %v996, %v1012
  %v1029 = vmax.f32 %v997, %v1013
  %v1030 = vmax.f32 %v998, %v1014
  %v1031 = vmax.f32 %v999, %v1015
  %v1032 = vmax.f32 %v1000, %v1016
  %v1033 = vmax.f32 %v1001, %v1017
  %v1034 = vmax.f32 %v1002, %v1018
  %1035 = vst.msk [vmem:[#allocation3 + $0xf] sm:$0x1] %vm842, %v1019
  %1036 = vst.msk [vmem:[#allocation3 + $0x1f] sm:$0x1] %vm842, %v1020
  %1037 = vst.msk [vmem:[#allocation3 + $0x2f] sm:$0x1] %vm842, %v1021
  %1038 = vst.msk [vmem:[#allocation3 + $0x3f] sm:$0x1] %vm842, %v1022
  %1039 = vst.msk [vmem:[#allocation3 + $0x4f] sm:$0x1] %vm842, %v1023
  %1040 = vst.msk [vmem:[#allocation3 + $0x5f] sm:$0x1] %vm842, %v1024
  %1041 = vst.msk [vmem:[#allocation3 + $0x6f] sm:$0x1] %vm842, %v1025
  %1042 = vst.msk [vmem:[#allocation3 + $0x7f] sm:$0x1] %vm842, %v1026
  %1043 = vst.msk [vmem:[#allocation3 + $0x8f] sm:$0x1] %vm842, %v1027
  %1044 = vst.msk [vmem:[#allocation3 + $0x9f] sm:$0x1] %vm842, %v1028
  %1045 = vst.msk [vmem:[#allocation3 + $0xaf] sm:$0x1] %vm842, %v1029
  %1046 = vst.msk [vmem:[#allocation3 + $0xbf] sm:$0x1] %vm842, %v1030
  %1047 = vst.msk [vmem:[#allocation3 + $0xcf] sm:$0x1] %vm842, %v1031
  %1048 = vst.msk [vmem:[#allocation3 + $0xdf] sm:$0x1] %vm842, %v1032
  %1049 = vst.msk [vmem:[#allocation3 + $0xef] sm:$0x1] %vm842, %v1033
  %1050 = vst.msk [vmem:[#allocation3 + $0xff] sm:$0x1] %vm842, %v1034
  %s1051 = scalar_lea.vmem [#allocation3], 256
  %1052 = vst.msk [vmem:[%s1051] sm:$0xff] %vm40, 0.0
  %1053 = vst.msk [vmem:[%s1051 + $0x8] sm:$0xff] %vm40, 0.0
  %1054 = vst.msk [vmem:[%s1051 + $0x10] sm:$0xff] %vm40, 0.0
  %1055 = vst.msk [vmem:[%s1051 + $0x18] sm:$0xff] %vm40, 0.0
  %1056 = vst.msk [vmem:[%s1051 + $0x20] sm:$0xff] %vm40, 0.0
  %1057 = vst.msk [vmem:[%s1051 + $0x28] sm:$0xff] %vm40, 0.0
  %1058 = vst.msk [vmem:[%s1051 + $0x30] sm:$0xff] %vm40, 0.0
  %1059 = vst.msk [vmem:[%s1051 + $0x38] sm:$0xff] %vm40, 0.0
  %1060 = vst.msk [vmem:[%s1051 + $0x40] sm:$0xff] %vm40, 0.0
  %1061 = vst.msk [vmem:[%s1051 + $0x48] sm:$0xff] %vm40, 0.0
  %1062 = vst.msk [vmem:[%s1051 + $0x50] sm:$0xff] %vm40, 0.0
  %1063 = vst.msk [vmem:[%s1051 + $0x58] sm:$0xff] %vm40, 0.0
  %1064 = vst.msk [vmem:[%s1051 + $0x60] sm:$0xff] %vm40, 0.0
  %1065 = vst.msk [vmem:[%s1051 + $0x68] sm:$0xff] %vm40, 0.0
  %1066 = vst.msk [vmem:[%s1051 + $0x70] sm:$0xff] %vm40, 0.0
  %1067 = vst.msk [vmem:[%s1051 + $0x78] sm:$0xff] %vm40, 0.0
  %v1068 = vld [vmem:[#allocation3] sm:$0xff]
  %v1069 = vld [vmem:[#allocation3 + $0x8] sm:$0xff]
  %v1070 = vld [vmem:[#allocation3 + $0x10] sm:$0xff]
  %v1071 = vld [vmem:[#allocation3 + $0x18] sm:$0xff]
  %v1072 = vld [vmem:[#allocation3 + $0x20] sm:$0xff]
  %v1073 = vld [vmem:[#allocation3 + $0x28] sm:$0xff]
  %v1074 = vld [vmem:[#allocation3 + $0x30] sm:$0xff]
  %v1075 = vld [vmem:[#allocation3 + $0x38] sm:$0xff]
  %v1076 = vld [vmem:[#allocation3 + $0x40] sm:$0xff]
  %v1077 = vld [vmem:[#allocation3 + $0x48] sm:$0xff]
  %v1078 = vld [vmem:[#allocation3 + $0x50] sm:$0xff]
  %v1079 = vld [vmem:[#allocation3 + $0x58] sm:$0xff]
  %v1080 = vld [vmem:[#allocation3 + $0x60] sm:$0xff]
  %v1081 = vld [vmem:[#allocation3 + $0x68] sm:$0xff]
  %v1082 = vld [vmem:[#allocation3 + $0x70] sm:$0xff]
  %v1083 = vld [vmem:[#allocation3 + $0x78] sm:$0xff]
  %v1084 = vld [vmem:[#allocation3 + $0x80] sm:$0xff]
  %v1085 = vld [vmem:[#allocation3 + $0x88] sm:$0xff]
  %v1086 = vld [vmem:[#allocation3 + $0x90] sm:$0xff]
  %v1087 = vld [vmem:[#allocation3 + $0x98] sm:$0xff]
  %v1088 = vld [vmem:[#allocation3 + $0xa0] sm:$0xff]
  %v1089 = vld [vmem:[#allocation3 + $0xa8] sm:$0xff]
  %v1090 = vld [vmem:[#allocation3 + $0xb0] sm:$0xff]
  %v1091 = vld [vmem:[#allocation3 + $0xb8] sm:$0xff]
  %v1092 = vld [vmem:[#allocation3 + $0xc0] sm:$0xff]
  %v1093 = vld [vmem:[#allocation3 + $0xc8] sm:$0xff]
  %v1094 = vld [vmem:[#allocation3 + $0xd0] sm:$0xff]
  %v1095 = vld [vmem:[#allocation3 + $0xd8] sm:$0xff]
  %s1096 = scalar_lea.vmem [#allocation3], 16
  %v1097 = vld [vmem:[%s1096] sm:$0xff]
  %v1098 = vld [vmem:[%s1096 + $0x8] sm:$0xff]
  %v1099 = vld [vmem:[%s1096 + $0x10] sm:$0xff]
  %v1100 = vld [vmem:[%s1096 + $0x18] sm:$0xff]
  %v1101 = vld [vmem:[%s1096 + $0x20] sm:$0xff]
  %v1102 = vld [vmem:[%s1096 + $0x28] sm:$0xff]
  %v1103 = vld [vmem:[%s1096 + $0x30] sm:$0xff]
  %v1104 = vld [vmem:[%s1096 + $0x38] sm:$0xff]
  %v1105 = vld [vmem:[%s1096 + $0x40] sm:$0xff]
  %v1106 = vld [vmem:[%s1096 + $0x48] sm:$0xff]
  %v1107 = vld [vmem:[%s1096 + $0x50] sm:$0xff]
  %v1108 = vld [vmem:[%s1096 + $0x58] sm:$0xff]
  %v1109 = vld [vmem:[%s1096 + $0x60] sm:$0xff]
  %v1110 = vld [vmem:[%s1096 + $0x68] sm:$0xff]
  %v1111 = vld [vmem:[%s1096 + $0x70] sm:$0xff]
  %v1112 = vld [vmem:[%s1096 + $0x78] sm:$0xff]
  %v1113 = vld [vmem:[%s1096 + $0x80] sm:$0xff]
  %v1114 = vld [vmem:[%s1096 + $0x88] sm:$0xff]
  %v1115 = vld [vmem:[%s1096 + $0x90] sm:$0xff]
  %v1116 = vld [vmem:[%s1096 + $0x98] sm:$0xff]
  %v1117 = vld [vmem:[%s1096 + $0xa0] sm:$0xff]
  %v1118 = vld [vmem:[%s1096 + $0xa8] sm:$0xff]
  %v1119 = vld [vmem:[%s1096 + $0xb0] sm:$0xff]
  %v1120 = vld [vmem:[%s1096 + $0xb8] sm:$0xff]
  %v1121 = vld [vmem:[%s1096 + $0xc0] sm:$0xff]
  %v1122 = vld [vmem:[%s1096 + $0xc8] sm:$0xff]
  %v1123 = vld [vmem:[%s1096 + $0xd0] sm:$0xff]
  %v1124 = vld [vmem:[%s1096 + $0xd8] sm:$0xff]
  %v1125 = vmax.f32 %v1068, %v1097
  %v1126 = vmax.f32 %v1069, %v1098
  %v1127 = vmax.f32 %v1070, %v1099
  %v1128 = vmax.f32 %v1071, %v1100
  %v1129 = vmax.f32 %v1072, %v1101
  %v1130 = vmax.f32 %v1073, %v1102
  %v1131 = vmax.f32 %v1074, %v1103
  %v1132 = vmax.f32 %v1075, %v1104
  %v1133 = vmax.f32 %v1076, %v1105
  %v1134 = vmax.f32 %v1077, %v1106
  %v1135 = vmax.f32 %v1078, %v1107
  %v1136 = vmax.f32 %v1079, %v1108
  %v1137 = vmax.f32 %v1080, %v1109
  %v1138 = vmax.f32 %v1081, %v1110
  %v1139 = vmax.f32 %v1082, %v1111
  %v1140 = vmax.f32 %v1083, %v1112
  %v1141 = vmax.f32 %v1084, %v1113
  %v1142 = vmax.f32 %v1085, %v1114
  %v1143 = vmax.f32 %v1086, %v1115
  %v1144 = vmax.f32 %v1087, %v1116
  %v1145 = vmax.f32 %v1088, %v1117
  %v1146 = vmax.f32 %v1089, %v1118
  %v1147 = vmax.f32 %v1090, %v1119
  %v1148 = vmax.f32 %v1091, %v1120
  %v1149 = vmax.f32 %v1092, %v1121
  %v1150 = vmax.f32 %v1093, %v1122
  %v1151 = vmax.f32 %v1094, %v1123
  %v1152 = vmax.f32 %v1095, %v1124
  %s1153 = scalar_lea.vmem [#allocation3], 32
  %v1154 = vld [vmem:[%s1153] sm:$0xff]
  %v1155 = vld [vmem:[%s1153 + $0x8] sm:$0xff]
  %v1156 = vld [vmem:[%s1153 + $0x10] sm:$0xff]
  %v1157 = vld [vmem:[%s1153 + $0x18] sm:$0xff]
  %v1158 = vld [vmem:[%s1153 + $0x20] sm:$0xff]
  %v1159 = vld [vmem:[%s1153 + $0x28] sm:$0xff]
  %v1160 = vld [vmem:[%s1153 + $0x30] sm:$0xff]
  %v1161 = vld [vmem:[%s1153 + $0x38] sm:$0xff]
  %v1162 = vld [vmem:[%s1153 + $0x40] sm:$0xff]
  %v1163 = vld [vmem:[%s1153 + $0x48] sm:$0xff]
  %v1164 = vld [vmem:[%s1153 + $0x50] sm:$0xff]
  %v1165 = vld [vmem:[%s1153 + $0x58] sm:$0xff]
  %v1166 = vld [vmem:[%s1153 + $0x60] sm:$0xff]
  %v1167 = vld [vmem:[%s1153 + $0x68] sm:$0xff]
  %v1168 = vld [vmem:[%s1153 + $0x70] sm:$0xff]
  %v1169 = vld [vmem:[%s1153 + $0x78] sm:$0xff]
  %v1170 = vld [vmem:[%s1153 + $0x80] sm:$0xff]
  %v1171 = vld [vmem:[%s1153 + $0x88] sm:$0xff]
  %v1172 = vld [vmem:[%s1153 + $0x90] sm:$0xff]
  %v1173 = vld [vmem:[%s1153 + $0x98] sm:$0xff]
  %v1174 = vld [vmem:[%s1153 + $0xa0] sm:$0xff]
  %v1175 = vld [vmem:[%s1153 + $0xa8] sm:$0xff]
  %v1176 = vld [vmem:[%s1153 + $0xb0] sm:$0xff]
  %v1177 = vld [vmem:[%s1153 + $0xb8] sm:$0xff]
  %v1178 = vld [vmem:[%s1153 + $0xc0] sm:$0xff]
  %v1179 = vld [vmem:[%s1153 + $0xc8] sm:$0xff]
  %v1180 = vld [vmem:[%s1153 + $0xd0] sm:$0xff]
  %v1181 = vld [vmem:[%s1153 + $0xd8] sm:$0xff]
  %v1182 = vmax.f32 %v1125, %v1154
  %v1183 = vmax.f32 %v1126, %v1155
  %v1184 = vmax.f32 %v1127, %v1156
  %v1185 = vmax.f32 %v1128, %v1157
  %v1186 = vmax.f32 %v1129, %v1158
  %v1187 = vmax.f32 %v1130, %v1159
  %v1188 = vmax.f32 %v1131, %v1160
  %v1189 = vmax.f32 %v1132, %v1161
  %v1190 = vmax.f32 %v1133, %v1162
  %v1191 = vmax.f32 %v1134, %v1163
  %v1192 = vmax.f32 %v1135, %v1164
  %v1193 = vmax.f32 %v1136, %v1165
  %v1194 = vmax.f32 %v1137, %v1166
  %v1195 = vmax.f32 %v1138, %v1167
  %v1196 = vmax.f32 %v1139, %v1168
  %v1197 = vmax.f32 %v1140, %v1169
  %v1198 = vmax.f32 %v1141, %v1170
  %v1199 = vmax.f32 %v1142, %v1171
  %v1200 = vmax.f32 %v1143, %v1172
  %v1201 = vmax.f32 %v1144, %v1173
  %v1202 = vmax.f32 %v1145, %v1174
  %v1203 = vmax.f32 %v1146, %v1175
  %v1204 = vmax.f32 %v1147, %v1176
  %v1205 = vmax.f32 %v1148, %v1177
  %v1206 = vmax.f32 %v1149, %v1178
  %v1207 = vmax.f32 %v1150, %v1179
  %v1208 = vmax.f32 %v1151, %v1180
  %v1209 = vmax.f32 %v1152, %v1181
  %s1210 = scalar_lea.vmem [#allocation3], 64
  %v1211 = vld [vmem:[%s1210] sm:$0xff]
  %v1212 = vld [vmem:[%s1210 + $0x8] sm:$0xff]
  %v1213 = vld [vmem:[%s1210 + $0x10] sm:$0xff]
  %v1214 = vld [vmem:[%s1210 + $0x18] sm:$0xff]
  %v1215 = vld [vmem:[%s1210 + $0x20] sm:$0xff]
  %v1216 = vld [vmem:[%s1210 + $0x28] sm:$0xff]
  %v1217 = vld [vmem:[%s1210 + $0x30] sm:$0xff]
  %v1218 = vld [vmem:[%s1210 + $0x38] sm:$0xff]
  %v1219 = vld [vmem:[%s1210 + $0x40] sm:$0xff]
  %v1220 = vld [vmem:[%s1210 + $0x48] sm:$0xff]
  %v1221 = vld [vmem:[%s1210 + $0x50] sm:$0xff]
  %v1222 = vld [vmem:[%s1210 + $0x58] sm:$0xff]
  %v1223 = vld [vmem:[%s1210 + $0x60] sm:$0xff]
  %v1224 = vld [vmem:[%s1210 + $0x68] sm:$0xff]
  %v1225 = vld [vmem:[%s1210 + $0x70] sm:$0xff]
  %v1226 = vld [vmem:[%s1210 + $0x78] sm:$0xff]
  %v1227 = vld [vmem:[%s1210 + $0x80] sm:$0xff]
  %v1228 = vld [vmem:[%s1210 + $0x88] sm:$0xff]
  %v1229 = vld [vmem:[%s1210 + $0x90] sm:$0xff]
  %v1230 = vld [vmem:[%s1210 + $0x98] sm:$0xff]
  %v1231 = vld [vmem:[%s1210 + $0xa0] sm:$0xff]
  %v1232 = vld [vmem:[%s1210 + $0xa8] sm:$0xff]
  %v1233 = vld [vmem:[%s1210 + $0xb0] sm:$0xff]
  %v1234 = vld [vmem:[%s1210 + $0xb8] sm:$0xff]
  %v1235 = vld [vmem:[%s1210 + $0xc0] sm:$0xff]
  %v1236 = vld [vmem:[%s1210 + $0xc8] sm:$0xff]
  %v1237 = vld [vmem:[%s1210 + $0xd0] sm:$0xff]
  %v1238 = vld [vmem:[%s1210 + $0xd8] sm:$0xff]
  %v1239 = vmax.f32 %v1182, %v1211
  %v1240 = vmax.f32 %v1183, %v1212
  %v1241 = vmax.f32 %v1184, %v1213
  %v1242 = vmax.f32 %v1185, %v1214
  %v1243 = vmax.f32 %v1186, %v1215
  %v1244 = vmax.f32 %v1187, %v1216
  %v1245 = vmax.f32 %v1188, %v1217
  %v1246 = vmax.f32 %v1189, %v1218
  %v1247 = vmax.f32 %v1190, %v1219
  %v1248 = vmax.f32 %v1191, %v1220
  %v1249 = vmax.f32 %v1192, %v1221
  %v1250 = vmax.f32 %v1193, %v1222
  %v1251 = vmax.f32 %v1194, %v1223
  %v1252 = vmax.f32 %v1195, %v1224
  %v1253 = vmax.f32 %v1196, %v1225
  %v1254 = vmax.f32 %v1197, %v1226
  %v1255 = vmax.f32 %v1198, %v1227
  %v1256 = vmax.f32 %v1199, %v1228
  %v1257 = vmax.f32 %v1200, %v1229
  %v1258 = vmax.f32 %v1201, %v1230
  %v1259 = vmax.f32 %v1202, %v1231
  %v1260 = vmax.f32 %v1203, %v1232
  %v1261 = vmax.f32 %v1204, %v1233
  %v1262 = vmax.f32 %v1205, %v1234
  %v1263 = vmax.f32 %v1206, %v1235
  %v1264 = vmax.f32 %v1207, %v1236
  %v1265 = vmax.f32 %v1208, %v1237
  %v1266 = vmax.f32 %v1209, %v1238
  %s1267 = scalar_lea.vmem [#allocation3], 80
  %v1268 = vld [vmem:[%s1267] sm:$0xff]
  %v1269 = vld [vmem:[%s1267 + $0x8] sm:$0xff]
  %v1270 = vld [vmem:[%s1267 + $0x10] sm:$0xff]
  %v1271 = vld [vmem:[%s1267 + $0x18] sm:$0xff]
  %v1272 = vld [vmem:[%s1267 + $0x20] sm:$0xff]
  %v1273 = vld [vmem:[%s1267 + $0x28] sm:$0xff]
  %v1274 = vld [vmem:[%s1267 + $0x30] sm:$0xff]
  %v1275 = vld [vmem:[%s1267 + $0x38] sm:$0xff]
  %v1276 = vld [vmem:[%s1267 + $0x40] sm:$0xff]
  %v1277 = vld [vmem:[%s1267 + $0x48] sm:$0xff]
  %v1278 = vld [vmem:[%s1267 + $0x50] sm:$0xff]
  %v1279 = vld [vmem:[%s1267 + $0x58] sm:$0xff]
  %v1280 = vld [vmem:[%s1267 + $0x60] sm:$0xff]
  %v1281 = vld [vmem:[%s1267 + $0x68] sm:$0xff]
  %v1282 = vld [vmem:[%s1267 + $0x70] sm:$0xff]
  %v1283 = vld [vmem:[%s1267 + $0x78] sm:$0xff]
  %v1284 = vld [vmem:[%s1267 + $0x80] sm:$0xff]
  %v1285 = vld [vmem:[%s1267 + $0x88] sm:$0xff]
  %v1286 = vld [vmem:[%s1267 + $0x90] sm:$0xff]
  %v1287 = vld [vmem:[%s1267 + $0x98] sm:$0xff]
  %v1288 = vld [vmem:[%s1267 + $0xa0] sm:$0xff]
  %v1289 = vld [vmem:[%s1267 + $0xa8] sm:$0xff]
  %v1290 = vld [vmem:[%s1267 + $0xb0] sm:$0xff]
  %v1291 = vld [vmem:[%s1267 + $0xb8] sm:$0xff]
  %v1292 = vld [vmem:[%s1267 + $0xc0] sm:$0xff]
  %v1293 = vld [vmem:[%s1267 + $0xc8] sm:$0xff]
  %v1294 = vld [vmem:[%s1267 + $0xd0] sm:$0xff]
  %v1295 = vld [vmem:[%s1267 + $0xd8] sm:$0xff]
  %v1296 = vmax.f32 %v1239, %v1268
  %v1297 = vmax.f32 %v1240, %v1269
  %v1298 = vmax.f32 %v1241, %v1270
  %v1299 = vmax.f32 %v1242, %v1271
  %v1300 = vmax.f32 %v1243, %v1272
  %v1301 = vmax.f32 %v1244, %v1273
  %v1302 = vmax.f32 %v1245, %v1274
  %v1303 = vmax.f32 %v1246, %v1275
  %v1304 = vmax.f32 %v1247, %v1276
  %v1305 = vmax.f32 %v1248, %v1277
  %v1306 = vmax.f32 %v1249, %v1278
  %v1307 = vmax.f32 %v1250, %v1279
  %v1308 = vmax.f32 %v1251, %v1280
  %v1309 = vmax.f32 %v1252, %v1281
  %v1310 = vmax.f32 %v1253, %v1282
  %v1311 = vmax.f32 %v1254, %v1283
  %v1312 = vmax.f32 %v1255, %v1284
  %v1313 = vmax.f32 %v1256, %v1285
  %v1314 = vmax.f32 %v1257, %v1286
  %v1315 = vmax.f32 %v1258, %v1287
  %v1316 = vmax.f32 %v1259, %v1288
  %v1317 = vmax.f32 %v1260, %v1289
  %v1318 = vmax.f32 %v1261, %v1290
  %v1319 = vmax.f32 %v1262, %v1291
  %v1320 = vmax.f32 %v1263, %v1292
  %v1321 = vmax.f32 %v1264, %v1293
  %v1322 = vmax.f32 %v1265, %v1294
  %v1323 = vmax.f32 %v1266, %v1295
  %s1324 = scalar_lea.vmem [#allocation3], 96
  %v1325 = vld [vmem:[%s1324] sm:$0xff]
  %v1326 = vld [vmem:[%s1324 + $0x8] sm:$0xff]
  %v1327 = vld [vmem:[%s1324 + $0x10] sm:$0xff]
  %v1328 = vld [vmem:[%s1324 + $0x18] sm:$0xff]
  %v1329 = vld [vmem:[%s1324 + $0x20] sm:$0xff]
  %v1330 = vld [vmem:[%s1324 + $0x28] sm:$0xff]
  %v1331 = vld [vmem:[%s1324 + $0x30] sm:$0xff]
  %v1332 = vld [vmem:[%s1324 + $0x38] sm:$0xff]
  %v1333 = vld [vmem:[%s1324 + $0x40] sm:$0xff]
  %v1334 = vld [vmem:[%s1324 + $0x48] sm:$0xff]
  %v1335 = vld [vmem:[%s1324 + $0x50] sm:$0xff]
  %v1336 = vld [vmem:[%s1324 + $0x58] sm:$0xff]
  %v1337 = vld [vmem:[%s1324 + $0x60] sm:$0xff]
  %v1338 = vld [vmem:[%s1324 + $0x68] sm:$0xff]
  %v1339 = vld [vmem:[%s1324 + $0x70] sm:$0xff]
  %v1340 = vld [vmem:[%s1324 + $0x78] sm:$0xff]
  %v1341 = vld [vmem:[%s1324 + $0x80] sm:$0xff]
  %v1342 = vld [vmem:[%s1324 + $0x88] sm:$0xff]
  %v1343 = vld [vmem:[%s1324 + $0x90] sm:$0xff]
  %v1344 = vld [vmem:[%s1324 + $0x98] sm:$0xff]
  %v1345 = vld [vmem:[%s1324 + $0xa0] sm:$0xff]
  %v1346 = vld [vmem:[%s1324 + $0xa8] sm:$0xff]
  %v1347 = vld [vmem:[%s1324 + $0xb0] sm:$0xff]
  %v1348 = vld [vmem:[%s1324 + $0xb8] sm:$0xff]
  %v1349 = vld [vmem:[%s1324 + $0xc0] sm:$0xff]
  %v1350 = vld [vmem:[%s1324 + $0xc8] sm:$0xff]
  %v1351 = vld [vmem:[%s1324 + $0xd0] sm:$0xff]
  %v1352 = vld [vmem:[%s1324 + $0xd8] sm:$0xff]
  %v1353 = vmax.f32 %v1296, %v1325
  %v1354 = vmax.f32 %v1297, %v1326
  %v1355 = vmax.f32 %v1298, %v1327
  %v1356 = vmax.f32 %v1299, %v1328
  %v1357 = vmax.f32 %v1300, %v1329
  %v1358 = vmax.f32 %v1301, %v1330
  %v1359 = vmax.f32 %v1302, %v1331
  %v1360 = vmax.f32 %v1303, %v1332
  %v1361 = vmax.f32 %v1304, %v1333
  %v1362 = vmax.f32 %v1305, %v1334
  %v1363 = vmax.f32 %v1306, %v1335
  %v1364 = vmax.f32 %v1307, %v1336
  %v1365 = vmax.f32 %v1308, %v1337
  %v1366 = vmax.f32 %v1309, %v1338
  %v1367 = vmax.f32 %v1310, %v1339
  %v1368 = vmax.f32 %v1311, %v1340
  %v1369 = vmax.f32 %v1312, %v1341
  %v1370 = vmax.f32 %v1313, %v1342
  %v1371 = vmax.f32 %v1314, %v1343
  %v1372 = vmax.f32 %v1315, %v1344
  %v1373 = vmax.f32 %v1316, %v1345
  %v1374 = vmax.f32 %v1317, %v1346
  %v1375 = vmax.f32 %v1318, %v1347
  %v1376 = vmax.f32 %v1319, %v1348
  %v1377 = vmax.f32 %v1320, %v1349
  %v1378 = vmax.f32 %v1321, %v1350
  %v1379 = vmax.f32 %v1322, %v1351
  %v1380 = vmax.f32 %v1323, %v1352
  %s1381 = scalar_lea.vmem [#allocation3], 128
  %v1382 = vld [vmem:[%s1381] sm:$0xff]
  %v1383 = vld [vmem:[%s1381 + $0x8] sm:$0xff]
  %v1384 = vld [vmem:[%s1381 + $0x10] sm:$0xff]
  %v1385 = vld [vmem:[%s1381 + $0x18] sm:$0xff]
  %v1386 = vld [vmem:[%s1381 + $0x20] sm:$0xff]
  %v1387 = vld [vmem:[%s1381 + $0x28] sm:$0xff]
  %v1388 = vld [vmem:[%s1381 + $0x30] sm:$0xff]
  %v1389 = vld [vmem:[%s1381 + $0x38] sm:$0xff]
  %v1390 = vld [vmem:[%s1381 + $0x40] sm:$0xff]
  %v1391 = vld [vmem:[%s1381 + $0x48] sm:$0xff]
  %v1392 = vld [vmem:[%s1381 + $0x50] sm:$0xff]
  %v1393 = vld [vmem:[%s1381 + $0x58] sm:$0xff]
  %v1394 = vld [vmem:[%s1381 + $0x60] sm:$0xff]
  %v1395 = vld [vmem:[%s1381 + $0x68] sm:$0xff]
  %v1396 = vld [vmem:[%s1381 + $0x70] sm:$0xff]
  %v1397 = vld [vmem:[%s1381 + $0x78] sm:$0xff]
  %v1398 = vld [vmem:[%s1381 + $0x80] sm:$0xff]
  %v1399 = vld [vmem:[%s1381 + $0x88] sm:$0xff]
  %v1400 = vld [vmem:[%s1381 + $0x90] sm:$0xff]
  %v1401 = vld [vmem:[%s1381 + $0x98] sm:$0xff]
  %v1402 = vld [vmem:[%s1381 + $0xa0] sm:$0xff]
  %v1403 = vld [vmem:[%s1381 + $0xa8] sm:$0xff]
  %v1404 = vld [vmem:[%s1381 + $0xb0] sm:$0xff]
  %v1405 = vld [vmem:[%s1381 + $0xb8] sm:$0xff]
  %v1406 = vld [vmem:[%s1381 + $0xc0] sm:$0xff]
  %v1407 = vld [vmem:[%s1381 + $0xc8] sm:$0xff]
  %v1408 = vld [vmem:[%s1381 + $0xd0] sm:$0xff]
  %v1409 = vld [vmem:[%s1381 + $0xd8] sm:$0xff]
  %v1410 = vmax.f32 %v1353, %v1382
  %v1411 = vmax.f32 %v1354, %v1383
  %v1412 = vmax.f32 %v1355, %v1384
  %v1413 = vmax.f32 %v1356, %v1385
  %v1414 = vmax.f32 %v1357, %v1386
  %v1415 = vmax.f32 %v1358, %v1387
  %v1416 = vmax.f32 %v1359, %v1388
  %v1417 = vmax.f32 %v1360, %v1389
  %v1418 = vmax.f32 %v1361, %v1390
  %v1419 = vmax.f32 %v1362, %v1391
  %v1420 = vmax.f32 %v1363, %v1392
  %v1421 = vmax.f32 %v1364, %v1393
  %v1422 = vmax.f32 %v1365, %v1394
  %v1423 = vmax.f32 %v1366, %v1395
  %v1424 = vmax.f32 %v1367, %v1396
  %v1425 = vmax.f32 %v1368, %v1397
  %v1426 = vmax.f32 %v1369, %v1398
  %v1427 = vmax.f32 %v1370, %v1399
  %v1428 = vmax.f32 %v1371, %v1400
  %v1429 = vmax.f32 %v1372, %v1401
  %v1430 = vmax.f32 %v1373, %v1402
  %v1431 = vmax.f32 %v1374, %v1403
  %v1432 = vmax.f32 %v1375, %v1404
  %v1433 = vmax.f32 %v1376, %v1405
  %v1434 = vmax.f32 %v1377, %v1406
  %v1435 = vmax.f32 %v1378, %v1407
  %v1436 = vmax.f32 %v1379, %v1408
  %v1437 = vmax.f32 %v1380, %v1409
  %s1438 = scalar_lea.vmem [#allocation3], 144
  %v1439 = vld [vmem:[%s1438] sm:$0xff]
  %v1440 = vld [vmem:[%s1438 + $0x8] sm:$0xff]
  %v1441 = vld [vmem:[%s1438 + $0x10] sm:$0xff]
  %v1442 = vld [vmem:[%s1438 + $0x18] sm:$0xff]
  %v1443 = vld [vmem:[%s1438 + $0x20] sm:$0xff]
  %v1444 = vld [vmem:[%s1438 + $0x28] sm:$0xff]
  %v1445 = vld [vmem:[%s1438 + $0x30] sm:$0xff]
  %v1446 = vld [vmem:[%s1438 + $0x38] sm:$0xff]
  %v1447 = vld [vmem:[%s1438 + $0x40] sm:$0xff]
  %v1448 = vld [vmem:[%s1438 + $0x48] sm:$0xff]
  %v1449 = vld [vmem:[%s1438 + $0x50] sm:$0xff]
  %v1450 = vld [vmem:[%s1438 + $0x58] sm:$0xff]
  %v1451 = vld [vmem:[%s1438 + $0x60] sm:$0xff]
  %v1452 = vld [vmem:[%s1438 + $0x68] sm:$0xff]
  %v1453 = vld [vmem:[%s1438 + $0x70] sm:$0xff]
  %v1454 = vld [vmem:[%s1438 + $0x78] sm:$0xff]
  %v1455 = vld [vmem:[%s1438 + $0x80] sm:$0xff]
  %v1456 = vld [vmem:[%s1438 + $0x88] sm:$0xff]
  %v1457 = vld [vmem:[%s1438 + $0x90] sm:$0xff]
  %v1458 = vld [vmem:[%s1438 + $0x98] sm:$0xff]
  %v1459 = vld [vmem:[%s1438 + $0xa0] sm:$0xff]
  %v1460 = vld [vmem:[%s1438 + $0xa8] sm:$0xff]
  %v1461 = vld [vmem:[%s1438 + $0xb0] sm:$0xff]
  %v1462 = vld [vmem:[%s1438 + $0xb8] sm:$0xff]
  %v1463 = vld [vmem:[%s1438 + $0xc0] sm:$0xff]
  %v1464 = vld [vmem:[%s1438 + $0xc8] sm:$0xff]
  %v1465 = vld [vmem:[%s1438 + $0xd0] sm:$0xff]
  %v1466 = vld [vmem:[%s1438 + $0xd8] sm:$0xff]
  %v1467 = vmax.f32 %v1410, %v1439
  %v1468 = vmax.f32 %v1411, %v1440
  %v1469 = vmax.f32 %v1412, %v1441
  %v1470 = vmax.f32 %v1413, %v1442
  %v1471 = vmax.f32 %v1414, %v1443
  %v1472 = vmax.f32 %v1415, %v1444
  %v1473 = vmax.f32 %v1416, %v1445
  %v1474 = vmax.f32 %v1417, %v1446
  %v1475 = vmax.f32 %v1418, %v1447
  %v1476 = vmax.f32 %v1419, %v1448
  %v1477 = vmax.f32 %v1420, %v1449
  %v1478 = vmax.f32 %v1421, %v1450
  %v1479 = vmax.f32 %v1422, %v1451
  %v1480 = vmax.f32 %v1423, %v1452
  %v1481 = vmax.f32 %v1424, %v1453
  %v1482 = vmax.f32 %v1425, %v1454
  %v1483 = vmax.f32 %v1426, %v1455
  %v1484 = vmax.f32 %v1427, %v1456
  %v1485 = vmax.f32 %v1428, %v1457
  %v1486 = vmax.f32 %v1429, %v1458
  %v1487 = vmax.f32 %v1430, %v1459
  %v1488 = vmax.f32 %v1431, %v1460
  %v1489 = vmax.f32 %v1432, %v1461
  %v1490 = vmax.f32 %v1433, %v1462
  %v1491 = vmax.f32 %v1434, %v1463
  %v1492 = vmax.f32 %v1435, %v1464
  %v1493 = vmax.f32 %v1436, %v1465
  %v1494 = vmax.f32 %v1437, %v1466
  %s1495 = scalar_lea.vmem [#allocation3], 160
  %v1496 = vld [vmem:[%s1495] sm:$0xff]
  %v1497 = vld [vmem:[%s1495 + $0x8] sm:$0xff]
  %v1498 = vld [vmem:[%s1495 + $0x10] sm:$0xff]
  %v1499 = vld [vmem:[%s1495 + $0x18] sm:$0xff]
  %v1500 = vld [vmem:[%s1495 + $0x20] sm:$0xff]
  %v1501 = vld [vmem:[%s1495 + $0x28] sm:$0xff]
  %v1502 = vld [vmem:[%s1495 + $0x30] sm:$0xff]
  %v1503 = vld [vmem:[%s1495 + $0x38] sm:$0xff]
  %v1504 = vld [vmem:[%s1495 + $0x40] sm:$0xff]
  %v1505 = vld [vmem:[%s1495 + $0x48] sm:$0xff]
  %v1506 = vld [vmem:[%s1495 + $0x50] sm:$0xff]
  %v1507 = vld [vmem:[%s1495 + $0x58] sm:$0xff]
  %v1508 = vld [vmem:[%s1495 + $0x60] sm:$0xff]
  %v1509 = vld [vmem:[%s1495 + $0x68] sm:$0xff]
  %v1510 = vld [vmem:[%s1495 + $0x70] sm:$0xff]
  %v1511 = vld [vmem:[%s1495 + $0x78] sm:$0xff]
  %v1512 = vld [vmem:[%s1495 + $0x80] sm:$0xff]
  %v1513 = vld [vmem:[%s1495 + $0x88] sm:$0xff]
  %v1514 = vld [vmem:[%s1495 + $0x90] sm:$0xff]
  %v1515 = vld [vmem:[%s1495 + $0x98] sm:$0xff]
  %v1516 = vld [vmem:[%s1495 + $0xa0] sm:$0xff]
  %v1517 = vld [vmem:[%s1495 + $0xa8] sm:$0xff]
  %v1518 = vld [vmem:[%s1495 + $0xb0] sm:$0xff]
  %v1519 = vld [vmem:[%s1495 + $0xb8] sm:$0xff]
  %v1520 = vld [vmem:[%s1495 + $0xc0] sm:$0xff]
  %v1521 = vld [vmem:[%s1495 + $0xc8] sm:$0xff]
  %v1522 = vld [vmem:[%s1495 + $0xd0] sm:$0xff]
  %v1523 = vld [vmem:[%s1495 + $0xd8] sm:$0xff]
  %v1524 = vmax.f32 %v1467, %v1496
  %v1525 = vmax.f32 %v1468, %v1497
  %v1526 = vmax.f32 %v1469, %v1498
  %v1527 = vmax.f32 %v1470, %v1499
  %v1528 = vmax.f32 %v1471, %v1500
  %v1529 = vmax.f32 %v1472, %v1501
  %v1530 = vmax.f32 %v1473, %v1502
  %v1531 = vmax.f32 %v1474, %v1503
  %v1532 = vmax.f32 %v1475, %v1504
  %v1533 = vmax.f32 %v1476, %v1505
  %v1534 = vmax.f32 %v1477, %v1506
  %v1535 = vmax.f32 %v1478, %v1507
  %v1536 = vmax.f32 %v1479, %v1508
  %v1537 = vmax.f32 %v1480, %v1509
  %v1538 = vmax.f32 %v1481, %v1510
  %v1539 = vmax.f32 %v1482, %v1511
  %v1540 = vmax.f32 %v1483, %v1512
  %v1541 = vmax.f32 %v1484, %v1513
  %v1542 = vmax.f32 %v1485, %v1514
  %v1543 = vmax.f32 %v1486, %v1515
  %v1544 = vmax.f32 %v1487, %v1516
  %v1545 = vmax.f32 %v1488, %v1517
  %v1546 = vmax.f32 %v1489, %v1518
  %v1547 = vmax.f32 %v1490, %v1519
  %v1548 = vmax.f32 %v1491, %v1520
  %v1549 = vmax.f32 %v1492, %v1521
  %v1550 = vmax.f32 %v1493, %v1522
  %v1551 = vmax.f32 %v1494, %v1523
  %s1552 = scalar_lea.vmem %s1, 16
  %1553 = vst.msk [vmem:[%s1552] sm:$0xff] %vm40, %v1524
  %1554 = vst.msk [vmem:[%s1552 + $0x8] sm:$0xff] %vm40, %v1525
  %1555 = vst.msk [vmem:[%s1552 + $0x10] sm:$0xff] %vm40, %v1526
  %1556 = vst.msk [vmem:[%s1552 + $0x18] sm:$0xff] %vm40, %v1527
  %1557 = vst.msk [vmem:[%s1552 + $0x20] sm:$0xff] %vm40, %v1528
  %1558 = vst.msk [vmem:[%s1552 + $0x28] sm:$0xff] %vm40, %v1529
  %1559 = vst.msk [vmem:[%s1552 + $0x30] sm:$0xff] %vm40, %v1530
  %1560 = vst.msk [vmem:[%s1552 + $0x38] sm:$0xff] %vm40, %v1531
  %1561 = vst.msk [vmem:[%s1552 + $0x40] sm:$0xff] %vm40, %v1532
  %1562 = vst.msk [vmem:[%s1552 + $0x48] sm:$0xff] %vm40, %v1533
  %1563 = vst.msk [vmem:[%s1552 + $0x50] sm:$0xff] %vm40, %v1534
  %1564 = vst.msk [vmem:[%s1552 + $0x58] sm:$0xff] %vm40, %v1535
  %1565 = vst.msk [vmem:[%s1552 + $0x60] sm:$0xff] %vm40, %v1536
  %1566 = vst.msk [vmem:[%s1552 + $0x68] sm:$0xff] %vm40, %v1537
  %1567 = vst.msk [vmem:[%s1552 + $0x70] sm:$0xff] %vm40, %v1538
  %1568 = vst.msk [vmem:[%s1552 + $0x78] sm:$0xff] %vm40, %v1539
  %1569 = vst.msk [vmem:[%s1552 + $0x80] sm:$0xff] %vm40, %v1540
  %1570 = vst.msk [vmem:[%s1552 + $0x88] sm:$0xff] %vm40, %v1541
  %1571 = vst.msk [vmem:[%s1552 + $0x90] sm:$0xff] %vm40, %v1542
  %1572 = vst.msk [vmem:[%s1552 + $0x98] sm:$0xff] %vm40, %v1543
  %1573 = vst.msk [vmem:[%s1552 + $0xa0] sm:$0xff] %vm40, %v1544
  %1574 = vst.msk [vmem:[%s1552 + $0xa8] sm:$0xff] %vm40, %v1545
  %1575 = vst.msk [vmem:[%s1552 + $0xb0] sm:$0xff] %vm40, %v1546
  %1576 = vst.msk [vmem:[%s1552 + $0xb8] sm:$0xff] %vm40, %v1547
  %1577 = vst.msk [vmem:[%s1552 + $0xc0] sm:$0xff] %vm40, %v1548
  %1578 = vst.msk [vmem:[%s1552 + $0xc8] sm:$0xff] %vm40, %v1549
  %1579 = vst.msk [vmem:[%s1552 + $0xd0] sm:$0xff] %vm40, %v1550
  %1580 = vst.msk [vmem:[%s1552 + $0xd8] sm:$0xff] %vm40, %v1551
  %v1581 = vld [vmem:[#allocation3] sm:$0xff]
  %v1582 = vld [vmem:[#allocation3 + $0x8] sm:$0xff]
  %v1583 = vld [vmem:[%s1096] sm:$0xff]
  %v1584 = vld [vmem:[%s1096 + $0x8] sm:$0xff]
  %v1585 = vmax.f32 %v1581, %v1583
  %v1586 = vmax.f32 %v1582, %v1584
  %v1587 = vld [vmem:[%s1210] sm:$0xff]
  %v1588 = vld [vmem:[%s1210 + $0x8] sm:$0xff]
  %v1589 = vmax.f32 %v1585, %v1587
  %v1590 = vmax.f32 %v1586, %v1588
  %v1591 = vld [vmem:[%s1267] sm:$0xff]
  %v1592 = vld [vmem:[%s1267 + $0x8] sm:$0xff]
  %v1593 = vmax.f32 %v1589, %v1591
  %v1594 = vmax.f32 %v1590, %v1592
  %v1595 = vld [vmem:[%s1381] sm:$0xff]
  %v1596 = vld [vmem:[%s1381 + $0x8] sm:$0xff]
  %v1597 = vmax.f32 %v1593, %v1595
  %v1598 = vmax.f32 %v1594, %v1596
  %v1599 = vld [vmem:[%s1438] sm:$0xff]
  %v1600 = vld [vmem:[%s1438 + $0x8] sm:$0xff]
  %v1601 = vmax.f32 %v1597, %v1599
  %v1602 = vmax.f32 %v1598, %v1600
  %1603 = vst.msk [vmem:[%s1] sm:$0xff] %vm40, %v1601
  %1604 = vst.msk [vmem:[%s1 + $0x8] sm:$0xff] %vm40, %v1602
  %s1605 = scalar_lea.vmem [#allocation3], 224
  %v1606 = vld [vmem:[%s1605] sm:$0xff]
  %v1607 = vld [vmem:[%s1605 + $0x8] sm:$0xff]
  %s1608 = scalar_lea.vmem [#allocation3], 240
  %v1609 = vld [vmem:[%s1608] sm:$0xff]
  %v1610 = vld [vmem:[%s1608 + $0x8] sm:$0xff]
  %v1611 = vmax.f32 %v1606, %v1609
  %v1612 = vmax.f32 %v1607, %v1610
  %s1613 = scalar_lea.vmem [#allocation3], 288
  %v1614 = vld [vmem:[%s1613] sm:$0xff]
  %v1615 = vld [vmem:[%s1613 + $0x8] sm:$0xff]
  %v1616 = vmax.f32 %v1611, %v1614
  %v1617 = vmax.f32 %v1612, %v1615
  %s1618 = scalar_lea.vmem [#allocation3], 304
  %v1619 = vld [vmem:[%s1618] sm:$0xff]
  %v1620 = vld [vmem:[%s1618 + $0x8] sm:$0xff]
  %v1621 = vmax.f32 %v1616, %v1619
  %v1622 = vmax.f32 %v1617, %v1620
  %s1623 = scalar_lea.vmem [#allocation3], 352
  %v1624 = vld [vmem:[%s1623] sm:$0xff]
  %v1625 = vld [vmem:[%s1623 + $0x8] sm:$0xff]
  %v1626 = vmax.f32 %v1621, %v1624
  %v1627 = vmax.f32 %v1622, %v1625
  %s1628 = scalar_lea.vmem [#allocation3], 368
  %v1629 = vld [vmem:[%s1628] sm:$0xff]
  %v1630 = vld [vmem:[%s1628 + $0x8] sm:$0xff]
  %v1631 = vmax.f32 %v1626, %v1629
  %v1632 = vmax.f32 %v1627, %v1630
  %s1633 = scalar_lea.vmem %s1, 240
  %1634 = vst.msk [vmem:[%s1633] sm:$0xff] %vm40, %v1631
  %1635 = vst.msk [vmem:[%s1633 + $0x8] sm:$0xff] %vm40, %v1632
  // Predicated region
  $region6: #{tpu_custom_call.1} parent=0 // pred_check
    _
  $region7: #{tpu_custom_call.1} parent=0 // pred_check_branch
    %1637 = sbr.rel (0) target = $region9
  $region8: #{tpu_custom_call.1} parent=0 // pred_region
    _
  $region9: #{tpu_custom_call.1} parent=0 // pred_fallthru
    _
  // Predicated region
  $region10: #{tpu_custom_call.1} parent=0 // pred_check
    _
  $region11: #{tpu_custom_call.1} parent=0 // pred_check_branch
    %1639 = sbr.rel (0) target = $region13
  $region12: #{tpu_custom_call.1} parent=0 // pred_region
    _
  $region13: #{tpu_custom_call.1} parent=0 // pred_fallthru
    _

</llo_original>
